<compile_context>
chip_gen: v7x
topology: tpu7x:2x2x1
jax: 0.10.0
libtpu: 0.0.40
codegen_flags: <defaults>
</compile_context>

<pallas_src>
import functools
import math

import jax
import jax.numpy as jnp
from jax.experimental import pallas as pl
from jax.experimental.pallas import tpu as pltpu

_LANE = 128
_DOUT_SUB = 8          # loc rows padded to one sublane tile (Dout=2 -> 8)


def _round_up(x, m):
    return ((x + m - 1) // m) * m


def _policy_mlp_kernel(x_ref, w1_ref, b1_ref, w2_ref, b2_ref, w3_ref, b3_ref,
                       out_ref, *, precision):
    """One batch tile: relu -> relu -> tanh.  Output stored transposed (8, TM)."""
    f32 = jnp.float32
    x = x_ref[...]                                                     # (TM, 135)
    h = jnp.dot(x, w1_ref[...], preferred_element_type=f32, precision=precision)
    h = jnp.maximum(h + b1_ref[...], 0.0)                              # (TM, 128)
    h = jnp.dot(h, w2_ref[...], preferred_element_type=f32, precision=precision)
    h = jnp.maximum(h + b2_ref[...], 0.0)                              # (TM, 128)
    o = jnp.dot(h, w3_ref[...], preferred_element_type=f32, precision=precision)
    o = o + b3_ref[...]                                                # (TM, 128)
    # Transposed, lane-dense store: write only 8 sublanes instead of a 128-wide
    # padded row block (~16x less HBM write traffic); the lane dim (TM) is a
    # multiple of 128 (large-N path) or the full batch dim (small-N path).
    o_t = jnp.transpose(o)                                             # (128, TM) XLU transpose
    out_ref[...] = jnp.tanh(o_t[:_DOUT_SUB, :]).astype(out_ref.dtype)  # (8, TM)


def prepare_policy_params(params):
    """Hoist the torch-layout -> padded/transposed conversion out of the forward path.

    Call once per parameter update (e.g. once per MAML adapt step), not per forward.
    """
    f32 = jnp.float32

    def pad2(a, rows, cols):
        a = jnp.asarray(a, f32)
        return jnp.pad(a, ((0, rows - a.shape[0]), (0, cols - a.shape[1])))

    w1 = jnp.asarray(params["fc1.weight"], f32)       # (H, Din)
    w2 = jnp.asarray(params["fc2.weight"], f32)       # (H, H)
    w3 = jnp.asarray(params["fc3.weight"], f32)       # (Dout, H)
    H, D_in = w1.shape
    D_out = w3.shape[0]
    H_p = _round_up(H, _LANE)
    Dout_p = _round_up(D_out, _LANE)

    return {
        "d_in": D_in, "h": H, "d_out": D_out, "h_p": H_p, "dout_p": Dout_p,
        # x's feature dim is NOT padded (stays 135): the W1^T block keeps the
        # true contraction length, so no extra x copy / DMA amplification.
        "w1": pad2(w1.T, D_in, H_p),                                   # (135, 128)
        "b1": pad2(jnp.asarray(params["fc1.bias"], f32)[None, :], 1, H_p),
        "w2": pad2(w2.T, H_p, H_p),                                    # (128, 128)
        "b2": pad2(jnp.asarray(params["fc2.bias"], f32)[None, :], 1, H_p),
        "w3": pad2(w3.T, H_p, Dout_p),                                 # (128, 128)
        "b3": pad2(jnp.asarray(params["fc3.bias"], f32)[None, :], 1, Dout_p),
        "sigma": jnp.asarray(params["sigma"], f32),
    }


def policy_forward(x, prepared, *, min_std=1e-6,
                   precision=jax.lax.Precision.HIGHEST):
    """x: (N, 135) f32; prepared: output of prepare_policy_params.

    Returns (loc (N, 2), scale (2,)) — the parameters of Normal(loc, scale).
    """
    f32 = jnp.float32
    x = jnp.asarray(x, f32)
    N, D_in = x.shape
    assert D_in == prepared["d_in"]
    H, D_out = prepared["h"], prepared["d_out"]
    H_p, Dout_p = prepared["h_p"], prepared["dout_p"]

    # Tile/grid selection (perf review):
    #  * small batches: one grid step, block = full batch dim (no x padding,
    #    no pipeline prologue/epilogue, weights DMA'd exactly once).
    #  * large batches: 512-row tiles -> >=2 "parallel" steps so v7x megacore
    #    can split the grid, while the VMEM working set stays ~2.5 MiB.
    tile_m = N if N <= 512 else 512
    grid_m = pl.cdiv(N, tile_m)

    cost = pl.CostEstimate(
        flops=2 * N * (D_in * H + H * H + H * D_out),
        transcendentals=N * D_out,
        bytes_accessed=4 * (N * D_in + D_in * H_p + H_p * H_p + H_p * Dout_p
                            + 2 * H_p + Dout_p + _DOUT_SUB * N),
    )

    kernel = functools.partial(_policy_mlp_kernel, precision=precision)
    loc_t = pl.pallas_call(
        kernel,
        out_shape=jax.ShapeDtypeStruct((_DOUT_SUB, N), f32),
        grid_spec=pltpu.PrefetchScalarGridSpec(
            num_scalar_prefetch=0,
            grid=(grid_m,),
            in_specs=[
                pl.BlockSpec((tile_m, D_in), lambda i: (i, 0)),    # x tile (unpadded features)
                pl.BlockSpec((D_in, H_p), lambda i: (0, 0)),       # W1^T, VMEM-resident
                pl.BlockSpec((1, H_p), lambda i: (0, 0)),          # b1
                pl.BlockSpec((H_p, H_p), lambda i: (0, 0)),        # W2^T
                pl.BlockSpec((1, H_p), lambda i: (0, 0)),          # b2
                pl.BlockSpec((H_p, Dout_p), lambda i: (0, 0)),     # W3^T
                pl.BlockSpec((1, Dout_p), lambda i: (0, 0)),       # b3
            ],
            out_specs=pl.BlockSpec((_DOUT_SUB, tile_m), lambda i: (0, i)),
        ),
        compiler_params=pltpu.CompilerParams(
            dimension_semantics=("parallel",)),
        cost_estimate=cost,
    )(x, prepared["w1"], prepared["b1"], prepared["w2"], prepared["b2"],
      prepared["w3"], prepared["b3"])

    loc = jnp.transpose(loc_t[:D_out, :])                              # (N, 2)
    # scale = exp(clamp(sigma, min=log(min_std))): 2 scalars, done outside the kernel.
    scale = jnp.exp(jnp.maximum(prepared["sigma"], math.log(min_std)))
    # TODO(synk): torch.distributions.Normal object construction has no Pallas
    # equivalent; (loc, scale) fully parameterize the returned distribution.
    return loc, scale


def _reference_forward(x, params, min_std=1e-6):
    hi = jax.lax.Precision.HIGHEST
    h = jax.nn.relu(jnp.dot(x, params["fc1.weight"].T, precision=hi) + params["fc1.bias"])
    h = jax.nn.relu(jnp.dot(h, params["fc2.weight"].T, precision=hi) + params["fc2.bias"])
    loc = jnp.tanh(jnp.dot(h, params["fc3.weight"].T, precision=hi) + params["fc3.bias"])
    scale = jnp.exp(jnp.maximum(params["sigma"], math.log(min_std)))
    return loc, scale


if __name__ == "__main__":
    key = jax.random.PRNGKey(0)
    N, D_in, H, D_out = 16, 135, 100, 2
    ks = jax.random.split(key, 4)

    def xavier_uniform(k, fan_out, fan_in):
        bound = math.sqrt(6.0 / (fan_in + fan_out))
        return jax.random.uniform(k, (fan_out, fan_in), jnp.float32, -bound, bound)

    # Mirrors Policy.__init__: xavier weights, zero biases, sigma = log(init_std=1.0).
    params = {
        "fc1.weight": xavier_uniform(ks[0], H, D_in),
        "fc1.bias": jnp.zeros((H,), jnp.float32),
        "fc2.weight": xavier_uniform(ks[1], H, H),
        "fc2.bias": jnp.zeros((H,), jnp.float32),
        "fc3.weight": xavier_uniform(ks[2], D_out, H),
        "fc3.bias": jnp.zeros((D_out,), jnp.float32),
        "sigma": jnp.full((D_out,), math.log(1.0), jnp.float32),
    }
    x = jax.random.normal(ks[3], (N, D_in), dtype=jnp.float32)

    # Weight pad/transpose hoisted out of the forward path (done once here).
    prepared = prepare_policy_params(params)

    # Small-N path: single grid step (tile = full batch), no x padding at all.
    loc, scale = policy_forward(x, prepared)
    jax.block_until_ready((loc, scale))

    ref_loc, ref_scale = _reference_forward(x, params)
    assert loc.shape == (N, D_out) and scale.shape == (D_out,)
    assert jnp.allclose(loc, ref_loc, atol=1e-4, rtol=1e-4), "loc mismatch vs reference"
    assert jnp.allclose(scale, ref_scale, atol=1e-6), "scale mismatch vs reference"

    print("KERNEL_OK")
</pallas_src>

<mosaic_0001>
module attributes {stable_mosaic.version = 11 : i64} {
  func.func @_policy_mlp_kernel(%arg0: i32, %arg1: memref<16x135xf32, #tpu.memory_space<vmem>>, %arg2: memref<135x128xf32, #tpu.memory_space<vmem>>, %arg3: memref<1x128xf32, #tpu.memory_space<vmem>>, %arg4: memref<128x128xf32, #tpu.memory_space<vmem>>, %arg5: memref<1x128xf32, #tpu.memory_space<vmem>>, %arg6: memref<128x128xf32, #tpu.memory_space<vmem>>, %arg7: memref<1x128xf32, #tpu.memory_space<vmem>>, %arg8: memref<8x16xf32, #tpu.memory_space<vmem>>) attributes {dimension_semantics = [#tpu.dimension_semantics<parallel>], iteration_bounds = array<i64: 1>, scalar_prefetch = 0 : i64, scratch_operands = 0 : i64, tpu.core_type = #tpu.core_type<tc>, window_params = [{transform_indices = @transform_0, window_bounds = array<i64: 16, 135>}, {pipeline_mode = #tpu.pipeline_mode<synchronous>, transform_indices = @transform_1, window_bounds = array<i64: 135, 128>}, {pipeline_mode = #tpu.pipeline_mode<synchronous>, transform_indices = @transform_2, window_bounds = array<i64: 1, 128>}, {pipeline_mode = #tpu.pipeline_mode<synchronous>, transform_indices = @transform_3, window_bounds = array<i64: 128, 128>}, {pipeline_mode = #tpu.pipeline_mode<synchronous>, transform_indices = @transform_4, window_bounds = array<i64: 1, 128>}, {pipeline_mode = #tpu.pipeline_mode<synchronous>, transform_indices = @transform_5, window_bounds = array<i64: 128, 128>}, {pipeline_mode = #tpu.pipeline_mode<synchronous>, transform_indices = @transform_6, window_bounds = array<i64: 1, 128>}, {transform_indices = @transform_7, window_bounds = array<i64: 8, 16>}]} {
    %c0 = arith.constant 0 : index
    %c0_0 = arith.constant 0 : index
    %0 = vector.load %arg1[%c0, %c0_0] : memref<16x135xf32, #tpu.memory_space<vmem>>, vector<16x135xf32>
    %c0_1 = arith.constant 0 : index
    %c0_2 = arith.constant 0 : index
    %1 = vector.load %arg2[%c0_1, %c0_2] : memref<135x128xf32, #tpu.memory_space<vmem>>, vector<135x128xf32>
    %cst = arith.constant dense<0.000000e+00> : vector<16x128xf32>
    %2 = tpu.matmul %0, %1, %cst {dimension_numbers = #tpu.dot_dimension_numbers<[1], [0], [0], [1], [0, 0, 1, 1], [], []>, precision = #tpu.contract_precision<fp32>} : vector<16x135xf32>, vector<135x128xf32>, vector<16x128xf32> -> vector<16x128xf32>
    %c0_3 = arith.constant 0 : index
    %c0_4 = arith.constant 0 : index
    %3 = vector.load %arg3[%c0_3, %c0_4] : memref<1x128xf32, #tpu.memory_space<vmem>>, vector<1x128xf32>
    %4 = vector.broadcast %3 : vector<1x128xf32> to vector<16x128xf32>
    %5 = arith.addf %2, %4 : vector<16x128xf32>
    %cst_5 = arith.constant 0.000000e+00 : f32
    %6 = vector.broadcast %cst_5 : f32 to vector<16x128xf32>
    %7 = arith.maximumf %5, %6 : vector<16x128xf32>
    %c0_6 = arith.constant 0 : index
    %c0_7 = arith.constant 0 : index
    %8 = vector.load %arg4[%c0_6, %c0_7] : memref<128x128xf32, #tpu.memory_space<vmem>>, vector<128x128xf32>
    %cst_8 = arith.constant dense<0.000000e+00> : vector<16x128xf32>
    %9 = tpu.matmul %7, %8, %cst_8 {dimension_numbers = #tpu.dot_dimension_numbers<[1], [0], [0], [1], [0, 0, 1, 1], [], []>, precision = #tpu.contract_precision<fp32>} : vector<16x128xf32>, vector<128x128xf32>, vector<16x128xf32> -> vector<16x128xf32>
    %c0_9 = arith.constant 0 : index
    %c0_10 = arith.constant 0 : index
    %10 = vector.load %arg5[%c0_9, %c0_10] : memref<1x128xf32, #tpu.memory_space<vmem>>, vector<1x128xf32>
    %11 = vector.broadcast %10 : vector<1x128xf32> to vector<16x128xf32>
    %12 = arith.addf %9, %11 : vector<16x128xf32>
    %cst_11 = arith.constant 0.000000e+00 : f32
    %13 = vector.broadcast %cst_11 : f32 to vector<16x128xf32>
    %14 = arith.maximumf %12, %13 : vector<16x128xf32>
    %c0_12 = arith.constant 0 : index
    %c0_13 = arith.constant 0 : index
    %15 = vector.load %arg6[%c0_12, %c0_13] : memref<128x128xf32, #tpu.memory_space<vmem>>, vector<128x128xf32>
    %cst_14 = arith.constant dense<0.000000e+00> : vector<16x128xf32>
    %16 = tpu.matmul %14, %15, %cst_14 {dimension_numbers = #tpu.dot_dimension_numbers<[1], [0], [0], [1], [0, 0, 1, 1], [], []>, precision = #tpu.contract_precision<fp32>} : vector<16x128xf32>, vector<128x128xf32>, vector<16x128xf32> -> vector<16x128xf32>
    %c0_15 = arith.constant 0 : index
    %c0_16 = arith.constant 0 : index
    %17 = vector.load %arg7[%c0_15, %c0_16] : memref<1x128xf32, #tpu.memory_space<vmem>>, vector<1x128xf32>
    %18 = vector.broadcast %17 : vector<1x128xf32> to vector<16x128xf32>
    %19 = arith.addf %16, %18 : vector<16x128xf32>
    %20 = tpu.transpose %19, [1, 0] : vector<16x128xf32> -> vector<128x16xf32>
    %21 = vector.extract_strided_slice %20 {offsets = [0, 0], sizes = [8, 16], strides = [1, 1]} : vector<128x16xf32> to vector<8x16xf32>
    %22 = math.tanh %21 : vector<8x16xf32>
    %c0_17 = arith.constant 0 : index
    %c0_18 = arith.constant 0 : index
    %23 = vector.load %arg8[%c0_17, %c0_18] : memref<8x16xf32, #tpu.memory_space<vmem>>, vector<8x16xf32>
    tpu.vector_store %arg8[%c0_17, %c0_18], %22 {strides = array<i32>} : memref<8x16xf32, #tpu.memory_space<vmem>>, vector<8x16xf32>,
    return
  }
  func.func @transform_0(%arg0: i32) -> (i32, i32) {
    %c0_i32 = arith.constant 0 : i32
    %c0_i32_0 = arith.constant 0 : i32
    return %arg0, %c0_i32 : i32, i32
  }
  func.func @transform_1(%arg0: i32) -> (i32, i32) {
    %c0_i32 = arith.constant 0 : i32
    %c0_i32_0 = arith.constant 0 : i32
    %c0_i32_1 = arith.constant 0 : i32
    return %c0_i32, %c0_i32_0 : i32, i32
  }
  func.func @transform_2(%arg0: i32) -> (i32, i32) {
    %c0_i32 = arith.constant 0 : i32
    %c0_i32_0 = arith.constant 0 : i32
    %c0_i32_1 = arith.constant 0 : i32
    return %c0_i32, %c0_i32_0 : i32, i32
  }
  func.func @transform_3(%arg0: i32) -> (i32, i32) {
    %c0_i32 = arith.constant 0 : i32
    %c0_i32_0 = arith.constant 0 : i32
    %c0_i32_1 = arith.constant 0 : i32
    return %c0_i32, %c0_i32_0 : i32, i32
  }
  func.func @transform_4(%arg0: i32) -> (i32, i32) {
    %c0_i32 = arith.constant 0 : i32
    %c0_i32_0 = arith.constant 0 : i32
    %c0_i32_1 = arith.constant 0 : i32
    return %c0_i32, %c0_i32_0 : i32, i32
  }
  func.func @transform_5(%arg0: i32) -> (i32, i32) {
    %c0_i32 = arith.constant 0 : i32
    %c0_i32_0 = arith.constant 0 : i32
    %c0_i32_1 = arith.constant 0 : i32
    return %c0_i32, %c0_i32_0 : i32, i32
  }
  func.func @transform_6(%arg0: i32) -> (i32, i32) {
    %c0_i32 = arith.constant 0 : i32
    %c0_i32_0 = arith.constant 0 : i32
    %c0_i32_1 = arith.constant 0 : i32
    return %c0_i32, %c0_i32_0 : i32, i32
  }
  func.func @transform_7(%arg0: i32) -> (i32, i32) {
    %c0_i32 = arith.constant 0 : i32
    %c0_i32_0 = arith.constant 0 : i32
    return %c0_i32, %arg0 : i32, i32
  }
}

</mosaic_0001>

<llo_original>
// kernel: tpu_custom_call.1
$region0: #{tpu_custom_call.1}
  #allocation0 [shape = 'u32[]', space=smem, size = 0x4, offset = 0x4, fixed_abs, tag = 'smem constant byte address 0x4 - core index']
  #allocation1 [shape = 'u32[144,128]{1,0:T(1,128)}', space=vmem, size = 0x12000, scoped, tag = 'internal scratch']
  %s0 = inlined_call_operand.hbm [shape: f32[16,135], index: 0, kind: input, shape index: {}]
  %s1 = inlined_call_operand.hbm [shape: f32[135,128], index: 1, kind: input, shape index: {}]
  %s2 = inlined_call_operand.vmem [shape: f32[1,128], index: 2, kind: input, shape index: {}]
  %s3 = inlined_call_operand.hbm [shape: f32[128,128], index: 3, kind: input, shape index: {}]
  %s4 = inlined_call_operand.vmem [shape: f32[1,128], index: 4, kind: input, shape index: {}]
  %s5 = inlined_call_operand.hbm [shape: f32[128,128], index: 5, kind: input, shape index: {}]
  %s6 = inlined_call_operand.vmem [shape: f32[1,128], index: 6, kind: input, shape index: {}]
  %s7 = inlined_call_operand.hbm [shape: f32[8,16], index: 7, kind: output, shape index: {}]
  %s8 = sld [smem:[#allocation0]]
  $region54: #{tpu_custom_call.1} parent=0
    _
  %s10 = ssub.s32 1, %s8
  %s11 = scalar_select 0, %s10, %s8
  $region1: #{tpu_custom_call.1} parent=0
    #allocation2 [shape = 'u8[16384]{0}', space=vmem, size = 0x4000, scoped, tag = 'input window, operand 0, single buffered']
    #allocation3 [shape = 's32[1]{0}', space=sflag, size = 0x4, scoped, tag = 'scoped memory for tpu_custom_call.1']
    #allocation4 [shape = 's32[1]{0}', space=sflag, size = 0x4, scoped, tag = 'scoped memory for tpu_custom_call.1']
    #allocation5 [shape = 'u8[69632]{0}', space=vmem, size = 0x11000, scoped, tag = 'input window, operand 1, single buffered']
    #allocation6 [shape = 's32[1]{0}', space=sflag, size = 0x4, scoped, tag = 'scoped memory for tpu_custom_call.1']
    #allocation7 [shape = 'u8[65536]{0}', space=vmem, size = 0x10000, scoped, tag = 'input window, operand 3, single buffered']
    #allocation8 [shape = 'u8[65536]{0}', space=vmem, size = 0x10000, scoped, tag = 'input window, operand 5, single buffered']
    #allocation9 [shape = 's32[1]{0}', space=sflag, size = 0x4, scoped, tag = 'scoped memory for tpu_custom_call.1']
    #allocation10 [shape = 'u8[4096]{0}', space=vmem, size = 0x1000, scoped, tag = 'output window, operand 0, single buffered']
    %12 = vsyncpa [#allocation3], 0
    %13 = vsyncpa [#allocation6], 0
    %14 = vsyncpa [#allocation9], 0
    %15 = vsyncpa [#allocation4], 0
    // Predicated region
    $region2: #{tpu_custom_call.1} parent=1 // pred_check
      _
    $region3: #{tpu_custom_call.1} parent=1 // pred_check_branch
      %17 = sbr.rel (0) target = $region5
    $region4: #{tpu_custom_call.1} parent=1 // pred_region
      %s19 = ssub.s32 512, 512
      %20 = vsyncadd [#allocation3], %s19
      %s21 = sshll.u32 [#allocation2], 4
      %s22 = int_to_ptr.vmem [resolvable:$true] %s21
      %27 = dma.hbm_to_vmem [thread:$0]  %s0, 512, %s22, [#allocation3], 256, 256, 16
    $region5: #{tpu_custom_call.1} parent=1 // pred_fallthru
      _
    // Predicated region
    $region6: #{tpu_custom_call.1} parent=1 // pred_check
      _
    $region7: #{tpu_custom_call.1} parent=1 // pred_check_branch
      %29 = sbr.rel (0) target = $region9
    $region8: #{tpu_custom_call.1} parent=1 // pred_region
      %s31 = ssub.s32 2176, 2176
      %32 = vsyncadd [#allocation6], %s31
      %s33 = sshll.u32 [#allocation5], 4
      %s34 = int_to_ptr.vmem [resolvable:$true] %s33
      %39 = dma.hbm_to_vmem [thread:$0]  %s1, 2176, %s34, [#allocation6], 128, 128, 8
    $region9: #{tpu_custom_call.1} parent=1 // pred_fallthru
      _
    // Predicated region
    $region10: #{tpu_custom_call.1} parent=1 // pred_check
      _
    $region11: #{tpu_custom_call.1} parent=1 // pred_check_branch
      %41 = sbr.rel (0) target = $region13
    $region12: #{tpu_custom_call.1} parent=1 // pred_region
      _
    $region13: #{tpu_custom_call.1} parent=1 // pred_fallthru
      _
    // Predicated region
    $region14: #{tpu_custom_call.1} parent=1 // pred_check
      _
    $region15: #{tpu_custom_call.1} parent=1 // pred_check_branch
      %43 = sbr.rel (0) target = $region17
    $region16: #{tpu_custom_call.1} parent=1 // pred_region
      %s45 = ssub.s32 2048, 2048
      %46 = vsyncadd [#allocation6], %s45
      %s47 = sshll.u32 [#allocation7], 4
      %s48 = int_to_ptr.vmem [resolvable:$true] %s47
      %53 = dma.hbm_to_vmem [thread:$0]  %s3, 2048, %s48, [#allocation6], 128, 128, 8
    $region17: #{tpu_custom_call.1} parent=1 // pred_fallthru
      _
    // Predicated region
    $region18: #{tpu_custom_call.1} parent=1 // pred_check
      _
    $region19: #{tpu_custom_call.1} parent=1 // pred_check_branch
      %55 = sbr.rel (0) target = $region21
    $region20: #{tpu_custom_call.1} parent=1 // pred_region
      _
    $region21: #{tpu_custom_call.1} parent=1 // pred_fallthru
      _
    // Predicated region
    $region22: #{tpu_custom_call.1} parent=1 // pred_check
      _
    $region23: #{tpu_custom_call.1} parent=1 // pred_check_branch
      %57 = sbr.rel (0) target = $region25
    $region24: #{tpu_custom_call.1} parent=1 // pred_region
      %s59 = ssub.s32 2048, 2048
      %60 = vsyncadd [#allocation9], %s59
      %s61 = sshll.u32 [#allocation8], 4
      %s62 = int_to_ptr.vmem [resolvable:$true] %s61
      %67 = dma.hbm_to_vmem [thread:$0]  %s5, 2048, %s62, [#allocation9], 128, 128, 8
    $region25: #{tpu_custom_call.1} parent=1 // pred_fallthru
      _
    // Predicated region
    $region26: #{tpu_custom_call.1} parent=1 // pred_check
      _
    $region27: #{tpu_custom_call.1} parent=1 // pred_check_branch
      %69 = sbr.rel (0) target = $region29
    $region28: #{tpu_custom_call.1} parent=1 // pred_region
      _
    $region29: #{tpu_custom_call.1} parent=1 // pred_fallthru
      _
    // Predicated region
    $region30: #{tpu_custom_call.1} parent=1 // pred_check
      _
    $region31: #{tpu_custom_call.1} parent=1 // pred_check_branch
      %71 = sbr.rel (0) target = $region33
    $region32: #{tpu_custom_call.1} parent=1 // pred_region
      %72 = dma.done [#allocation3], 512
    $region33: #{tpu_custom_call.1} parent=1 // pred_fallthru
      _
    // Predicated region
    $region34: #{tpu_custom_call.1} parent=1 // pred_check
      _
    $region35: #{tpu_custom_call.1} parent=1 // pred_check_branch
      %74 = sbr.rel (0) target = $region37
    $region36: #{tpu_custom_call.1} parent=1 // pred_region
      %75 = dma.done [#allocation6], 2176
    $region37: #{tpu_custom_call.1} parent=1 // pred_fallthru
      _
    // Predicated region
    $region38: #{tpu_custom_call.1} parent=1 // pred_check
      _
    $region39: #{tpu_custom_call.1} parent=1 // pred_check_branch
      %77 = sbr.rel (0) target = $region41
    $region40: #{tpu_custom_call.1} parent=1 // pred_region
      %78 = dma.done [#allocation6], 2048
    $region41: #{tpu_custom_call.1} parent=1 // pred_fallthru
      _
    // Predicated region
    $region42: #{tpu_custom_call.1} parent=1 // pred_check
      _
    $region43: #{tpu_custom_call.1} parent=1 // pred_check_branch
      %80 = sbr.rel (0) target = $region45
    $region44: #{tpu_custom_call.1} parent=1 // pred_region
      %81 = dma.done [#allocation9], 2048
    $region45: #{tpu_custom_call.1} parent=1 // pred_fallthru
      _
    %v82 = vld [vmem:[#allocation2] sm:$0xff]
    %v83 = vld [vmem:[#allocation2 + $0x8] sm:$0xff]
    %v84 = vld [vmem:[#allocation2 + $0x10] sm:$0xff]
    %v85 = vld [vmem:[#allocation2 + $0x18] sm:$0xff]
    %v86 = vld [vmem:[#allocation5] sm:$0xff]
    %v87 = vld [vmem:[#allocation5 + $0x8] sm:$0xff]
    %v88 = vld [vmem:[#allocation5 + $0x10] sm:$0xff]
    %v89 = vld [vmem:[#allocation5 + $0x18] sm:$0xff]
    %v90 = vld [vmem:[#allocation5 + $0x20] sm:$0xff]
    %v91 = vld [vmem:[#allocation5 + $0x28] sm:$0xff]
    %v92 = vld [vmem:[#allocation5 + $0x30] sm:$0xff]
    %v93 = vld [vmem:[#allocation5 + $0x38] sm:$0xff]
    %v94 = vld [vmem:[#allocation5 + $0x40] sm:$0xff]
    %v95 = vld [vmem:[#allocation5 + $0x48] sm:$0xff]
    %v96 = vld [vmem:[#allocation5 + $0x50] sm:$0xff]
    %v97 = vld [vmem:[#allocation5 + $0x58] sm:$0xff]
    %v98 = vld [vmem:[#allocation5 + $0x60] sm:$0xff]
    %v99 = vld [vmem:[#allocation5 + $0x68] sm:$0xff]
    %v100 = vld [vmem:[#allocation5 + $0x70] sm:$0xff]
    %v101 = vld [vmem:[#allocation5 + $0x78] sm:$0xff]
    %v102 = vld [vmem:[#allocation5 + $0x80] sm:$0x7f]
    %v103 = vld [vmem:[%s2] sm:$0x1]
    %v105 = vlaneseq
    %v106 = vshrl.u32 %v105, 7
    %v107 = vsub.s32 0, %v106
    %v108 = vrot.slane %v103, %v107
    %vm110 = vcmask 56320
    %v112 = vsel %vm110, %v83, 0
    %v115 = vsel %vm110, %v85, 0
    %vm117 = vcmask 1046528
    %v119 = vsel %vm117, %v102, 0
    %121 = vmatprep.subr.mxu0 0.0
    %v122 = vand.u32 %v86, 4294901760
    %123 = vmatpush1.msra.mxu0 %v122
    %124 = vmatprep.subr.mxu0 0.0
    %v125 = vand.u32 %v87, 4294901760
    %126 = vmatpush1.msra.mxu0 %v125
    %127 = vmatprep.subr.mxu0 0.0
    %v128 = vand.u32 %v88, 4294901760
    %129 = vmatpush1.msra.mxu0 %v128
    %130 = vmatprep.subr.mxu0 0.0
    %v131 = vand.u32 %v89, 4294901760
    %132 = vmatpush1.msra.mxu0 %v131
    %133 = vmatprep.subr.mxu0 0.0
    %v134 = vand.u32 %v90, 4294901760
    %135 = vmatpush1.msra.mxu0 %v134
    %136 = vmatprep.subr.mxu0 0.0
    %v137 = vand.u32 %v91, 4294901760
    %138 = vmatpush1.msra.mxu0 %v137
    %139 = vmatprep.subr.mxu0 0.0
    %v140 = vand.u32 %v92, 4294901760
    %141 = vmatpush1.msra.mxu0 %v140
    %142 = vmatprep.subr.mxu0 0.0
    %v143 = vand.u32 %v93, 4294901760
    %144 = vmatpush1.msra.mxu0 %v143
    %145 = vmatprep.subr.mxu0 0.0
    %v146 = vand.u32 %v94, 4294901760
    %147 = vmatpush1.msra.mxu0 %v146
    %148 = vmatprep.subr.mxu0 0.0
    %v149 = vand.u32 %v95, 4294901760
    %150 = vmatpush1.msra.mxu0 %v149
    %151 = vmatprep.subr.mxu0 0.0
    %v152 = vand.u32 %v96, 4294901760
    %153 = vmatpush1.msra.mxu0 %v152
    %154 = vmatprep.subr.mxu0 0.0
    %v155 = vand.u32 %v97, 4294901760
    %156 = vmatpush1.msra.mxu0 %v155
    %157 = vmatprep.subr.mxu0 0.0
    %v158 = vand.u32 %v98, 4294901760
    %159 = vmatpush1.msra.mxu0 %v158
    %160 = vmatprep.subr.mxu0 0.0
    %v161 = vand.u32 %v99, 4294901760
    %162 = vmatpush1.msra.mxu0 %v161
    %163 = vmatprep.subr.mxu0 0.0
    %v164 = vand.u32 %v100, 4294901760
    %165 = vmatpush1.msra.mxu0 %v164
    %166 = vmatprep.subr.mxu0 0.0
    %v167 = vand.u32 %v101, 4294901760
    %168 = vmatpush1.msra.mxu0 %v167
    %169 = vmatprep.subr.mxu0 0.0
    %v170 = vand.u32 %v119, 4294901760
    %171 = vmatpush1.msra.mxu0 %v170
    %172 = vmatprep.subr.mxu0 0.0
    %173 = vmatpush1.msra.mxu0 0.0
    %174 = vmatprep.subr.mxu0 0.0
    %175 = vmatpush1.msra.mxu0 0.0
    %176 = vmatprep.subr.mxu0 0.0
    %177 = vmatpush1.msra.mxu0 0.0
    %178 = vmatprep.subr.mxu0 0.0
    %179 = vmatpush1.msra.mxu0 0.0
    %180 = vmatprep.subr.mxu0 0.0
    %181 = vmatpush1.msra.mxu0 0.0
    %182 = vmatprep.subr.mxu0 0.0
    %183 = vmatpush1.msra.mxu0 0.0
    %184 = vmatprep.subr.mxu0 0.0
    %185 = vmatpush1.msra.mxu0 0.0
    %186 = vmatprep.subr.mxu0 0.0
    %187 = vmatpush1.msra.mxu0 0.0
    %188 = vmatprep.subr.mxu0 0.0
    %189 = vmatpush1.msra.mxu0 0.0
    %190 = vmatprep.subr.mxu0 0.0
    %191 = vmatpush1.msra.mxu0 0.0
    %192 = vmatprep.subr.mxu0 0.0
    %193 = vmatpush1.msra.mxu0 0.0
    %194 = vmatprep.subr.mxu0 0.0
    %195 = vmatpush1.msra.mxu0 0.0
    %196 = vmatprep.subr.mxu0 0.0
    %197 = vmatpush1.msra.mxu0 0.0
    %198 = vmatprep.subr.mxu0 0.0
    %199 = vmatpush1.msra.mxu0 0.0
    %200 = vmatprep.subr.mxu0 0.0
    %201 = vmatpush1.msra.mxu0 0.0
    %v202 = vand.u32 %v112, 4294901760
    %v203 = vsub.f32 %v112, %v202
    %v204 = vand.u32 %v203, 4294901760
    %v205 = vsub.f32 %v203, %v204
    %v206 = vand.u32 %v205, 4294901760
    %207 = vmatprep.mubr.f32.mxu0 %v206
    %v208 = vand.u32 %v82, 4294901760
    %v209 = vsub.f32 %v82, %v208
    %v210 = vand.u32 %v209, 4294901760
    %v211 = vsub.f32 %v209, %v210
    %v212 = vand.u32 %v211, 4294901760
    %213 = vmatmul.mubr.f32.gmra.mrb[0].mxu0 %v212
    %v214 = vpop.f32.mrb[0].mxu0
    %v215 = vadd.f32 %v108, %v214
    %v216 = vpop.f32.mrb[0].mxu0
    %v217 = vand.u32 %v115, 4294901760
    %v218 = vsub.f32 %v115, %v217
    %v219 = vand.u32 %v218, 4294901760
    %v220 = vsub.f32 %v218, %v219
    %v221 = vand.u32 %v220, 4294901760
    %222 = vmatprep.mubr.f32.mxu0 %v221
    %v223 = vand.u32 %v84, 4294901760
    %v224 = vsub.f32 %v84, %v223
    %v225 = vand.u32 %v224, 4294901760
    %v226 = vsub.f32 %v224, %v225
    %v227 = vand.u32 %v226, 4294901760
    %228 = vmatmul.mubr.f32.gmra.mrb[0].mxu0 %v227
    %v229 = vpop.f32.mrb[0].mxu0
    %v230 = vadd.f32 %v108, %v229
    %v231 = vpop.f32.mrb[0].mxu0
    %232 = vdwg.mxu0
    %233 = vmatprep.subr.mxu0 0.0
    %v234 = vand.u32 %v86, 4294901760
    %v235 = vsub.f32 %v86, %v234
    %v236 = vand.u32 %v235, 4294901760
    %v237 = vsub.f32 %v235, %v236
    %v238 = vand.u32 %v237, 4294901760
    %239 = vmatpush1.msra.mxu0 %v238
    %240 = vmatprep.subr.mxu0 0.0
    %v241 = vand.u32 %v87, 4294901760
    %v242 = vsub.f32 %v87, %v241
    %v243 = vand.u32 %v242, 4294901760
    %v244 = vsub.f32 %v242, %v243
    %v245 = vand.u32 %v244, 4294901760
    %246 = vmatpush1.msra.mxu0 %v245
    %247 = vmatprep.subr.mxu0 0.0
    %v248 = vand.u32 %v88, 4294901760
    %v249 = vsub.f32 %v88, %v248
    %v250 = vand.u32 %v249, 4294901760
    %v251 = vsub.f32 %v249, %v250
    %v252 = vand.u32 %v251, 4294901760
    %253 = vmatpush1.msra.mxu0 %v252
    %254 = vmatprep.subr.mxu0 0.0
    %v255 = vand.u32 %v89, 4294901760
    %v256 = vsub.f32 %v89, %v255
    %v257 = vand.u32 %v256, 4294901760
    %v258 = vsub.f32 %v256, %v257
    %v259 = vand.u32 %v258, 4294901760
    %260 = vmatpush1.msra.mxu0 %v259
    %261 = vmatprep.subr.mxu0 0.0
    %v262 = vand.u32 %v90, 4294901760
    %v263 = vsub.f32 %v90, %v262
    %v264 = vand.u32 %v263, 4294901760
    %v265 = vsub.f32 %v263, %v264
    %v266 = vand.u32 %v265, 4294901760
    %267 = vmatpush1.msra.mxu0 %v266
    %268 = vmatprep.subr.mxu0 0.0
    %v269 = vand.u32 %v91, 4294901760
    %v270 = vsub.f32 %v91, %v269
    %v271 = vand.u32 %v270, 4294901760
    %v272 = vsub.f32 %v270, %v271
    %v273 = vand.u32 %v272, 4294901760
    %274 = vmatpush1.msra.mxu0 %v273
    %275 = vmatprep.subr.mxu0 0.0
    %v276 = vand.u32 %v92, 4294901760
    %v277 = vsub.f32 %v92, %v276
    %v278 = vand.u32 %v277, 4294901760
    %v279 = vsub.f32 %v277, %v278
    %v280 = vand.u32 %v279, 4294901760
    %281 = vmatpush1.msra.mxu0 %v280
    %282 = vmatprep.subr.mxu0 0.0
    %v283 = vand.u32 %v93, 4294901760
    %v284 = vsub.f32 %v93, %v283
    %v285 = vand.u32 %v284, 4294901760
    %v286 = vsub.f32 %v284, %v285
    %v287 = vand.u32 %v286, 4294901760
    %288 = vmatpush1.msra.mxu0 %v287
    %289 = vmatprep.subr.mxu0 0.0
    %v290 = vand.u32 %v94, 4294901760
    %v291 = vsub.f32 %v94, %v290
    %v292 = vand.u32 %v291, 4294901760
    %v293 = vsub.f32 %v291, %v292
    %v294 = vand.u32 %v293, 4294901760
    %295 = vmatpush1.msra.mxu0 %v294
    %296 = vmatprep.subr.mxu0 0.0
    %v297 = vand.u32 %v95, 4294901760
    %v298 = vsub.f32 %v95, %v297
    %v299 = vand.u32 %v298, 4294901760
    %v300 = vsub.f32 %v298, %v299
    %v301 = vand.u32 %v300, 4294901760
    %302 = vmatpush1.msra.mxu0 %v301
    %303 = vmatprep.subr.mxu0 0.0
    %v304 = vand.u32 %v96, 4294901760
    %v305 = vsub.f32 %v96, %v304
    %v306 = vand.u32 %v305, 4294901760
    %v307 = vsub.f32 %v305, %v306
    %v308 = vand.u32 %v307, 4294901760
    %309 = vmatpush1.msra.mxu0 %v308
    %310 = vmatprep.subr.mxu0 0.0
    %v311 = vand.u32 %v97, 4294901760
    %v312 = vsub.f32 %v97, %v311
    %v313 = vand.u32 %v312, 4294901760
    %v314 = vsub.f32 %v312, %v313
    %v315 = vand.u32 %v314, 4294901760
    %316 = vmatpush1.msra.mxu0 %v315
    %317 = vmatprep.subr.mxu0 0.0
    %v318 = vand.u32 %v98, 4294901760
    %v319 = vsub.f32 %v98, %v318
    %v320 = vand.u32 %v319, 4294901760
    %v321 = vsub.f32 %v319, %v320
    %v322 = vand.u32 %v321, 4294901760
    %323 = vmatpush1.msra.mxu0 %v322
    %324 = vmatprep.subr.mxu0 0.0
    %v325 = vand.u32 %v99, 4294901760
    %v326 = vsub.f32 %v99, %v325
    %v327 = vand.u32 %v326, 4294901760
    %v328 = vsub.f32 %v326, %v327
    %v329 = vand.u32 %v328, 4294901760
    %330 = vmatpush1.msra.mxu0 %v329
    %331 = vmatprep.subr.mxu0 0.0
    %v332 = vand.u32 %v100, 4294901760
    %v333 = vsub.f32 %v100, %v332
    %v334 = vand.u32 %v333, 4294901760
    %v335 = vsub.f32 %v333, %v334
    %v336 = vand.u32 %v335, 4294901760
    %337 = vmatpush1.msra.mxu0 %v336
    %338 = vmatprep.subr.mxu0 0.0
    %v339 = vand.u32 %v101, 4294901760
    %v340 = vsub.f32 %v101, %v339
    %v341 = vand.u32 %v340, 4294901760
    %v342 = vsub.f32 %v340, %v341
    %v343 = vand.u32 %v342, 4294901760
    %344 = vmatpush1.msra.mxu0 %v343
    %345 = vmatprep.subr.mxu0 0.0
    %v346 = vand.u32 %v119, 4294901760
    %v347 = vsub.f32 %v119, %v346
    %v348 = vand.u32 %v347, 4294901760
    %v349 = vsub.f32 %v347, %v348
    %v350 = vand.u32 %v349, 4294901760
    %351 = vmatpush1.msra.mxu0 %v350
    %352 = vmatprep.subr.mxu0 0.0
    %353 = vmatpush1.msra.mxu0 0.0
    %354 = vmatprep.subr.mxu0 0.0
    %355 = vmatpush1.msra.mxu0 0.0
    %356 = vmatprep.subr.mxu0 0.0
    %357 = vmatpush1.msra.mxu0 0.0
    %358 = vmatprep.subr.mxu0 0.0
    %359 = vmatpush1.msra.mxu0 0.0
    %360 = vmatprep.subr.mxu0 0.0
    %361 = vmatpush1.msra.mxu0 0.0
    %362 = vmatprep.subr.mxu0 0.0
    %363 = vmatpush1.msra.mxu0 0.0
    %364 = vmatprep.subr.mxu0 0.0
    %365 = vmatpush1.msra.mxu0 0.0
    %366 = vmatprep.subr.mxu0 0.0
    %367 = vmatpush1.msra.mxu0 0.0
    %368 = vmatprep.subr.mxu0 0.0
    %369 = vmatpush1.msra.mxu0 0.0
    %370 = vmatprep.subr.mxu0 0.0
    %371 = vmatpush1.msra.mxu0 0.0
    %372 = vmatprep.subr.mxu0 0.0
    %373 = vmatpush1.msra.mxu0 0.0
    %374 = vmatprep.subr.mxu0 0.0
    %375 = vmatpush1.msra.mxu0 0.0
    %376 = vmatprep.subr.mxu0 0.0
    %377 = vmatpush1.msra.mxu0 0.0
    %378 = vmatprep.subr.mxu0 0.0
    %379 = vmatpush1.msra.mxu0 0.0
    %380 = vmatprep.subr.mxu0 0.0
    %381 = vmatpush1.msra.mxu0 0.0
    %v382 = vand.u32 %v112, 4294901760
    %383 = vmatprep.mubr.f32.mxu0 %v382
    %v384 = vand.u32 %v82, 4294901760
    %385 = vmatmul.mubr.f32.gmra.mrb[0].mxu0 %v384
    %v386 = vpop.f32.mrb[0].mxu0
    %v387 = vadd.f32 %v215, %v386
    %v388 = vpop.f32.mrb[0].mxu0
    %v389 = vand.u32 %v115, 4294901760
    %390 = vmatprep.mubr.f32.mxu0 %v389
    %v391 = vand.u32 %v84, 4294901760
    %392 = vmatmul.mubr.f32.gmra.mrb[0].mxu0 %v391
    %v393 = vpop.f32.mrb[0].mxu0
    %v394 = vadd.f32 %v230, %v393
    %v395 = vpop.f32.mrb[0].mxu0
    %396 = vdwg.mxu0
    %397 = vmatprep.subr.mxu0 0.0
    %v398 = vand.u32 %v86, 4294901760
    %v399 = vsub.f32 %v86, %v398
    %400 = vmatpush1.msra.mxu0 %v399
    %401 = vmatprep.subr.mxu0 0.0
    %v402 = vand.u32 %v87, 4294901760
    %v403 = vsub.f32 %v87, %v402
    %404 = vmatpush1.msra.mxu0 %v403
    %405 = vmatprep.subr.mxu0 0.0
    %v406 = vand.u32 %v88, 4294901760
    %v407 = vsub.f32 %v88, %v406
    %408 = vmatpush1.msra.mxu0 %v407
    %409 = vmatprep.subr.mxu0 0.0
    %v410 = vand.u32 %v89, 4294901760
    %v411 = vsub.f32 %v89, %v410
    %412 = vmatpush1.msra.mxu0 %v411
    %413 = vmatprep.subr.mxu0 0.0
    %v414 = vand.u32 %v90, 4294901760
    %v415 = vsub.f32 %v90, %v414
    %416 = vmatpush1.msra.mxu0 %v415
    %417 = vmatprep.subr.mxu0 0.0
    %v418 = vand.u32 %v91, 4294901760
    %v419 = vsub.f32 %v91, %v418
    %420 = vmatpush1.msra.mxu0 %v419
    %421 = vmatprep.subr.mxu0 0.0
    %v422 = vand.u32 %v92, 4294901760
    %v423 = vsub.f32 %v92, %v422
    %424 = vmatpush1.msra.mxu0 %v423
    %425 = vmatprep.subr.mxu0 0.0
    %v426 = vand.u32 %v93, 4294901760
    %v427 = vsub.f32 %v93, %v426
    %428 = vmatpush1.msra.mxu0 %v427
    %429 = vmatprep.subr.mxu0 0.0
    %v430 = vand.u32 %v94, 4294901760
    %v431 = vsub.f32 %v94, %v430
    %432 = vmatpush1.msra.mxu0 %v431
    %433 = vmatprep.subr.mxu0 0.0
    %v434 = vand.u32 %v95, 4294901760
    %v435 = vsub.f32 %v95, %v434
    %436 = vmatpush1.msra.mxu0 %v435
    %437 = vmatprep.subr.mxu0 0.0
    %v438 = vand.u32 %v96, 4294901760
    %v439 = vsub.f32 %v96, %v438
    %440 = vmatpush1.msra.mxu0 %v439
    %441 = vmatprep.subr.mxu0 0.0
    %v442 = vand.u32 %v97, 4294901760
    %v443 = vsub.f32 %v97, %v442
    %444 = vmatpush1.msra.mxu0 %v443
    %445 = vmatprep.subr.mxu0 0.0
    %v446 = vand.u32 %v98, 4294901760
    %v447 = vsub.f32 %v98, %v446
    %448 = vmatpush1.msra.mxu0 %v447
    %449 = vmatprep.subr.mxu0 0.0
    %v450 = vand.u32 %v99, 4294901760
    %v451 = vsub.f32 %v99, %v450
    %452 = vmatpush1.msra.mxu0 %v451
    %453 = vmatprep.subr.mxu0 0.0
    %v454 = vand.u32 %v100, 4294901760
    %v455 = vsub.f32 %v100, %v454
    %456 = vmatpush1.msra.mxu0 %v455
    %457 = vmatprep.subr.mxu0 0.0
    %v458 = vand.u32 %v101, 4294901760
    %v459 = vsub.f32 %v101, %v458
    %460 = vmatpush1.msra.mxu0 %v459
    %461 = vmatprep.subr.mxu0 0.0
    %v462 = vand.u32 %v119, 4294901760
    %v463 = vsub.f32 %v119, %v462
    %464 = vmatpush1.msra.mxu0 %v463
    %465 = vmatprep.subr.mxu0 0.0
    %466 = vmatpush1.msra.mxu0 0.0
    %467 = vmatprep.subr.mxu0 0.0
    %468 = vmatpush1.msra.mxu0 0.0
    %469 = vmatprep.subr.mxu0 0.0
    %470 = vmatpush1.msra.mxu0 0.0
    %471 = vmatprep.subr.mxu0 0.0
    %472 = vmatpush1.msra.mxu0 0.0
    %473 = vmatprep.subr.mxu0 0.0
    %474 = vmatpush1.msra.mxu0 0.0
    %475 = vmatprep.subr.mxu0 0.0
    %476 = vmatpush1.msra.mxu0 0.0
    %477 = vmatprep.subr.mxu0 0.0
    %478 = vmatpush1.msra.mxu0 0.0
    %479 = vmatprep.subr.mxu0 0.0
    %480 = vmatpush1.msra.mxu0 0.0
    %481 = vmatprep.subr.mxu0 0.0
    %482 = vmatpush1.msra.mxu0 0.0
    %483 = vmatprep.subr.mxu0 0.0
    %484 = vmatpush1.msra.mxu0 0.0
    %485 = vmatprep.subr.mxu0 0.0
    %486 = vmatpush1.msra.mxu0 0.0
    %487 = vmatprep.subr.mxu0 0.0
    %488 = vmatpush1.msra.mxu0 0.0
    %489 = vmatprep.subr.mxu0 0.0
    %490 = vmatpush1.msra.mxu0 0.0
    %491 = vmatprep.subr.mxu0 0.0
    %492 = vmatpush1.msra.mxu0 0.0
    %493 = vmatprep.subr.mxu0 0.0
    %494 = vmatpush1.msra.mxu0 0.0
    %v495 = vand.u32 %v112, 4294901760
    %v496 = vsub.f32 %v112, %v495
    %497 = vmatprep.mubr.f32.mxu0 %v496
    %v498 = vand.u32 %v82, 4294901760
    %v499 = vsub.f32 %v82, %v498
    %500 = vmatmul.mubr.f32.gmra.mrb[0].mxu0 %v499
    %v501 = vpop.f32.mrb[0].mxu0
    %v502 = vadd.f32 %v387, %v501
    %v503 = vpop.f32.mrb[0].mxu0
    %v504 = vand.u32 %v115, 4294901760
    %v505 = vsub.f32 %v115, %v504
    %506 = vmatprep.mubr.f32.mxu0 %v505
    %v507 = vand.u32 %v84, 4294901760
    %v508 = vsub.f32 %v84, %v507
    %509 = vmatmul.mubr.f32.gmra.mrb[0].mxu0 %v508
    %v510 = vpop.f32.mrb[0].mxu0
    %v511 = vadd.f32 %v394, %v510
    %v512 = vpop.f32.mrb[0].mxu0
    %513 = vdwg.mxu0
    %514 = vmatprep.subr.mxu0 0.0
    %v515 = vand.u32 %v86, 4294901760
    %516 = vmatpush1.msra.mxu0 %v515
    %517 = vmatprep.subr.mxu0 0.0
    %v518 = vand.u32 %v87, 4294901760
    %519 = vmatpush1.msra.mxu0 %v518
    %520 = vmatprep.subr.mxu0 0.0
    %v521 = vand.u32 %v88, 4294901760
    %522 = vmatpush1.msra.mxu0 %v521
    %523 = vmatprep.subr.mxu0 0.0
    %v524 = vand.u32 %v89, 4294901760
    %525 = vmatpush1.msra.mxu0 %v524
    %526 = vmatprep.subr.mxu0 0.0
    %v527 = vand.u32 %v90, 4294901760
    %528 = vmatpush1.msra.mxu0 %v527
    %529 = vmatprep.subr.mxu0 0.0
    %v530 = vand.u32 %v91, 4294901760
    %531 = vmatpush1.msra.mxu0 %v530
    %532 = vmatprep.subr.mxu0 0.0
    %v533 = vand.u32 %v92, 4294901760
    %534 = vmatpush1.msra.mxu0 %v533
    %535 = vmatprep.subr.mxu0 0.0
    %v536 = vand.u32 %v93, 4294901760
    %537 = vmatpush1.msra.mxu0 %v536
    %538 = vmatprep.subr.mxu0 0.0
    %v539 = vand.u32 %v94, 4294901760
    %540 = vmatpush1.msra.mxu0 %v539
    %541 = vmatprep.subr.mxu0 0.0
    %v542 = vand.u32 %v95, 4294901760
    %543 = vmatpush1.msra.mxu0 %v542
    %544 = vmatprep.subr.mxu0 0.0
    %v545 = vand.u32 %v96, 4294901760
    %546 = vmatpush1.msra.mxu0 %v545
    %547 = vmatprep.subr.mxu0 0.0
    %v548 = vand.u32 %v97, 4294901760
    %549 = vmatpush1.msra.mxu0 %v548
    %550 = vmatprep.subr.mxu0 0.0
    %v551 = vand.u32 %v98, 4294901760
    %552 = vmatpush1.msra.mxu0 %v551
    %553 = vmatprep.subr.mxu0 0.0
    %v554 = vand.u32 %v99, 4294901760
    %555 = vmatpush1.msra.mxu0 %v554
    %556 = vmatprep.subr.mxu0 0.0
    %v557 = vand.u32 %v100, 4294901760
    %558 = vmatpush1.msra.mxu0 %v557
    %559 = vmatprep.subr.mxu0 0.0
    %v560 = vand.u32 %v101, 4294901760
    %561 = vmatpush1.msra.mxu0 %v560
    %562 = vmatprep.subr.mxu0 0.0
    %v563 = vand.u32 %v119, 4294901760
    %564 = vmatpush1.msra.mxu0 %v563
    %565 = vmatprep.subr.mxu0 0.0
    %566 = vmatpush1.msra.mxu0 0.0
    %567 = vmatprep.subr.mxu0 0.0
    %568 = vmatpush1.msra.mxu0 0.0
    %569 = vmatprep.subr.mxu0 0.0
    %570 = vmatpush1.msra.mxu0 0.0
    %571 = vmatprep.subr.mxu0 0.0
    %572 = vmatpush1.msra.mxu0 0.0
    %573 = vmatprep.subr.mxu0 0.0
    %574 = vmatpush1.msra.mxu0 0.0
    %575 = vmatprep.subr.mxu0 0.0
    %576 = vmatpush1.msra.mxu0 0.0
    %577 = vmatprep.subr.mxu0 0.0
    %578 = vmatpush1.msra.mxu0 0.0
    %579 = vmatprep.subr.mxu0 0.0
    %580 = vmatpush1.msra.mxu0 0.0
    %581 = vmatprep.subr.mxu0 0.0
    %582 = vmatpush1.msra.mxu0 0.0
    %583 = vmatprep.subr.mxu0 0.0
    %584 = vmatpush1.msra.mxu0 0.0
    %585 = vmatprep.subr.mxu0 0.0
    %586 = vmatpush1.msra.mxu0 0.0
    %587 = vmatprep.subr.mxu0 0.0
    %588 = vmatpush1.msra.mxu0 0.0
    %589 = vmatprep.subr.mxu0 0.0
    %590 = vmatpush1.msra.mxu0 0.0
    %591 = vmatprep.subr.mxu0 0.0
    %592 = vmatpush1.msra.mxu0 0.0
    %593 = vmatprep.subr.mxu0 0.0
    %594 = vmatpush1.msra.mxu0 0.0
    %v595 = vand.u32 %v112, 4294901760
    %v596 = vsub.f32 %v112, %v595
    %v597 = vand.u32 %v596, 4294901760
    %598 = vmatprep.mubr.f32.mxu0 %v597
    %v599 = vand.u32 %v82, 4294901760
    %v600 = vsub.f32 %v82, %v599
    %v601 = vand.u32 %v600, 4294901760
    %602 = vmatmul.mubr.f32.gmra.mrb[0].mxu0 %v601
    %v603 = vpop.f32.mrb[0].mxu0
    %v604 = vadd.f32 %v502, %v603
    %v605 = vpop.f32.mrb[0].mxu0
    %v606 = vand.u32 %v115, 4294901760
    %v607 = vsub.f32 %v115, %v606
    %v608 = vand.u32 %v607, 4294901760
    %609 = vmatprep.mubr.f32.mxu0 %v608
    %v610 = vand.u32 %v84, 4294901760
    %v611 = vsub.f32 %v84, %v610
    %v612 = vand.u32 %v611, 4294901760
    %613 = vmatmul.mubr.f32.gmra.mrb[0].mxu0 %v612
    %v614 = vpop.f32.mrb[0].mxu0
    %v615 = vadd.f32 %v511, %v614
    %v616 = vpop.f32.mrb[0].mxu0
    %617 = vdwg.mxu0
    %618 = vmatprep.subr.mxu0 0.0
    %v619 = vand.u32 %v86, 4294901760
    %v620 = vsub.f32 %v86, %v619
    %v621 = vand.u32 %v620, 4294901760
    %622 = vmatpush1.msra.mxu0 %v621
    %623 = vmatprep.subr.mxu0 0.0
    %v624 = vand.u32 %v87, 4294901760
    %v625 = vsub.f32 %v87, %v624
    %v626 = vand.u32 %v625, 4294901760
    %627 = vmatpush1.msra.mxu0 %v626
    %628 = vmatprep.subr.mxu0 0.0
    %v629 = vand.u32 %v88, 4294901760
    %v630 = vsub.f32 %v88, %v629
    %v631 = vand.u32 %v630, 4294901760
    %632 = vmatpush1.msra.mxu0 %v631
    %633 = vmatprep.subr.mxu0 0.0
    %v634 = vand.u32 %v89, 4294901760
    %v635 = vsub.f32 %v89, %v634
    %v636 = vand.u32 %v635, 4294901760
    %637 = vmatpush1.msra.mxu0 %v636
    %638 = vmatprep.subr.mxu0 0.0
    %v639 = vand.u32 %v90, 4294901760
    %v640 = vsub.f32 %v90, %v639
    %v641 = vand.u32 %v640, 4294901760
    %642 = vmatpush1.msra.mxu0 %v641
    %643 = vmatprep.subr.mxu0 0.0
    %v644 = vand.u32 %v91, 4294901760
    %v645 = vsub.f32 %v91, %v644
    %v646 = vand.u32 %v645, 4294901760
    %647 = vmatpush1.msra.mxu0 %v646
    %648 = vmatprep.subr.mxu0 0.0
    %v649 = vand.u32 %v92, 4294901760
    %v650 = vsub.f32 %v92, %v649
    %v651 = vand.u32 %v650, 4294901760
    %652 = vmatpush1.msra.mxu0 %v651
    %653 = vmatprep.subr.mxu0 0.0
    %v654 = vand.u32 %v93, 4294901760
    %v655 = vsub.f32 %v93, %v654
    %v656 = vand.u32 %v655, 4294901760
    %657 = vmatpush1.msra.mxu0 %v656
    %658 = vmatprep.subr.mxu0 0.0
    %v659 = vand.u32 %v94, 4294901760
    %v660 = vsub.f32 %v94, %v659
    %v661 = vand.u32 %v660, 4294901760
    %662 = vmatpush1.msra.mxu0 %v661
    %663 = vmatprep.subr.mxu0 0.0
    %v664 = vand.u32 %v95, 4294901760
    %v665 = vsub.f32 %v95, %v664
    %v666 = vand.u32 %v665, 4294901760
    %667 = vmatpush1.msra.mxu0 %v666
    %668 = vmatprep.subr.mxu0 0.0
    %v669 = vand.u32 %v96, 4294901760
    %v670 = vsub.f32 %v96, %v669
    %v671 = vand.u32 %v670, 4294901760
    %672 = vmatpush1.msra.mxu0 %v671
    %673 = vmatprep.subr.mxu0 0.0
    %v674 = vand.u32 %v97, 4294901760
    %v675 = vsub.f32 %v97, %v674
    %v676 = vand.u32 %v675, 4294901760
    %677 = vmatpush1.msra.mxu0 %v676
    %678 = vmatprep.subr.mxu0 0.0
    %v679 = vand.u32 %v98, 4294901760
    %v680 = vsub.f32 %v98, %v679
    %v681 = vand.u32 %v680, 4294901760
    %682 = vmatpush1.msra.mxu0 %v681
    %683 = vmatprep.subr.mxu0 0.0
    %v684 = vand.u32 %v99, 4294901760
    %v685 = vsub.f32 %v99, %v684
    %v686 = vand.u32 %v685, 4294901760
    %687 = vmatpush1.msra.mxu0 %v686
    %688 = vmatprep.subr.mxu0 0.0
    %v689 = vand.u32 %v100, 4294901760
    %v690 = vsub.f32 %v100, %v689
    %v691 = vand.u32 %v690, 4294901760
    %692 = vmatpush1.msra.mxu0 %v691
    %693 = vmatprep.subr.mxu0 0.0
    %v694 = vand.u32 %v101, 4294901760
    %v695 = vsub.f32 %v101, %v694
    %v696 = vand.u32 %v695, 4294901760
    %697 = vmatpush1.msra.mxu0 %v696
    %698 = vmatprep.subr.mxu0 0.0
    %v699 = vand.u32 %v119, 4294901760
    %v700 = vsub.f32 %v119, %v699
    %v701 = vand.u32 %v700, 4294901760
    %702 = vmatpush1.msra.mxu0 %v701
    %703 = vmatprep.subr.mxu0 0.0
    %704 = vmatpush1.msra.mxu0 0.0
    %705 = vmatprep.subr.mxu0 0.0
    %706 = vmatpush1.msra.mxu0 0.0
    %707 = vmatprep.subr.mxu0 0.0
    %708 = vmatpush1.msra.mxu0 0.0
    %709 = vmatprep.subr.mxu0 0.0
    %710 = vmatpush1.msra.mxu0 0.0
    %711 = vmatprep.subr.mxu0 0.0
    %712 = vmatpush1.msra.mxu0 0.0
    %713 = vmatprep.subr.mxu0 0.0
    %714 = vmatpush1.msra.mxu0 0.0
    %715 = vmatprep.subr.mxu0 0.0
    %716 = vmatpush1.msra.mxu0 0.0
    %717 = vmatprep.subr.mxu0 0.0
    %718 = vmatpush1.msra.mxu0 0.0
    %719 = vmatprep.subr.mxu0 0.0
    %720 = vmatpush1.msra.mxu0 0.0
    %721 = vmatprep.subr.mxu0 0.0
    %722 = vmatpush1.msra.mxu0 0.0
    %723 = vmatprep.subr.mxu0 0.0
    %724 = vmatpush1.msra.mxu0 0.0
    %725 = vmatprep.subr.mxu0 0.0
    %726 = vmatpush1.msra.mxu0 0.0
    %727 = vmatprep.subr.mxu0 0.0
    %728 = vmatpush1.msra.mxu0 0.0
    %729 = vmatprep.subr.mxu0 0.0
    %730 = vmatpush1.msra.mxu0 0.0
    %731 = vmatprep.subr.mxu0 0.0
    %732 = vmatpush1.msra.mxu0 0.0
    %v733 = vand.u32 %v112, 4294901760
    %734 = vmatprep.mubr.f32.mxu0 %v733
    %v735 = vand.u32 %v82, 4294901760
    %736 = vmatmul.mubr.f32.gmra.mrb[0].mxu0 %v735
    %v737 = vpop.f32.mrb[0].mxu0
    %v738 = vadd.f32 %v604, %v737
    %v739 = vpop.f32.mrb[0].mxu0
    %v740 = vand.u32 %v115, 4294901760
    %741 = vmatprep.mubr.f32.mxu0 %v740
    %v742 = vand.u32 %v84, 4294901760
    %743 = vmatmul.mubr.f32.gmra.mrb[0].mxu0 %v742
    %v744 = vpop.f32.mrb[0].mxu0
    %v745 = vadd.f32 %v615, %v744
    %v746 = vpop.f32.mrb[0].mxu0
    %747 = vdwg.mxu0
    %748 = vmatprep.subr.mxu0 0.0
    %v749 = vand.u32 %v86, 4294901760
    %750 = vmatpush1.msra.mxu0 %v749
    %751 = vmatprep.subr.mxu0 0.0
    %v752 = vand.u32 %v87, 4294901760
    %753 = vmatpush1.msra.mxu0 %v752
    %754 = vmatprep.subr.mxu0 0.0
    %v755 = vand.u32 %v88, 4294901760
    %756 = vmatpush1.msra.mxu0 %v755
    %757 = vmatprep.subr.mxu0 0.0
    %v758 = vand.u32 %v89, 4294901760
    %759 = vmatpush1.msra.mxu0 %v758
    %760 = vmatprep.subr.mxu0 0.0
    %v761 = vand.u32 %v90, 4294901760
    %762 = vmatpush1.msra.mxu0 %v761
    %763 = vmatprep.subr.mxu0 0.0
    %v764 = vand.u32 %v91, 4294901760
    %765 = vmatpush1.msra.mxu0 %v764
    %766 = vmatprep.subr.mxu0 0.0
    %v767 = vand.u32 %v92, 4294901760
    %768 = vmatpush1.msra.mxu0 %v767
    %769 = vmatprep.subr.mxu0 0.0
    %v770 = vand.u32 %v93, 4294901760
    %771 = vmatpush1.msra.mxu0 %v770
    %772 = vmatprep.subr.mxu0 0.0
    %v773 = vand.u32 %v94, 4294901760
    %774 = vmatpush1.msra.mxu0 %v773
    %775 = vmatprep.subr.mxu0 0.0
    %v776 = vand.u32 %v95, 4294901760
    %777 = vmatpush1.msra.mxu0 %v776
    %778 = vmatprep.subr.mxu0 0.0
    %v779 = vand.u32 %v96, 4294901760
    %780 = vmatpush1.msra.mxu0 %v779
    %781 = vmatprep.subr.mxu0 0.0
    %v782 = vand.u32 %v97, 4294901760
    %783 = vmatpush1.msra.mxu0 %v782
    %784 = vmatprep.subr.mxu0 0.0
    %v785 = vand.u32 %v98, 4294901760
    %786 = vmatpush1.msra.mxu0 %v785
    %787 = vmatprep.subr.mxu0 0.0
    %v788 = vand.u32 %v99, 4294901760
    %789 = vmatpush1.msra.mxu0 %v788
    %790 = vmatprep.subr.mxu0 0.0
    %v791 = vand.u32 %v100, 4294901760
    %792 = vmatpush1.msra.mxu0 %v791
    %793 = vmatprep.subr.mxu0 0.0
    %v794 = vand.u32 %v101, 4294901760
    %795 = vmatpush1.msra.mxu0 %v794
    %796 = vmatprep.subr.mxu0 0.0
    %v797 = vand.u32 %v119, 4294901760
    %798 = vmatpush1.msra.mxu0 %v797
    %799 = vmatprep.subr.mxu0 0.0
    %800 = vmatpush1.msra.mxu0 0.0
    %801 = vmatprep.subr.mxu0 0.0
    %802 = vmatpush1.msra.mxu0 0.0
    %803 = vmatprep.subr.mxu0 0.0
    %804 = vmatpush1.msra.mxu0 0.0
    %805 = vmatprep.subr.mxu0 0.0
    %806 = vmatpush1.msra.mxu0 0.0
    %807 = vmatprep.subr.mxu0 0.0
    %808 = vmatpush1.msra.mxu0 0.0
    %809 = vmatprep.subr.mxu0 0.0
    %810 = vmatpush1.msra.mxu0 0.0
    %811 = vmatprep.subr.mxu0 0.0
    %812 = vmatpush1.msra.mxu0 0.0
    %813 = vmatprep.subr.mxu0 0.0
    %814 = vmatpush1.msra.mxu0 0.0
    %815 = vmatprep.subr.mxu0 0.0
    %816 = vmatpush1.msra.mxu0 0.0
    %817 = vmatprep.subr.mxu0 0.0
    %818 = vmatpush1.msra.mxu0 0.0
    %819 = vmatprep.subr.mxu0 0.0
    %820 = vmatpush1.msra.mxu0 0.0
    %821 = vmatprep.subr.mxu0 0.0
    %822 = vmatpush1.msra.mxu0 0.0
    %823 = vmatprep.subr.mxu0 0.0
    %824 = vmatpush1.msra.mxu0 0.0
    %825 = vmatprep.subr.mxu0 0.0
    %826 = vmatpush1.msra.mxu0 0.0
    %827 = vmatprep.subr.mxu0 0.0
    %828 = vmatpush1.msra.mxu0 0.0
    %v829 = vand.u32 %v112, 4294901760
    %830 = vmatprep.mubr.f32.mxu0 %v829
    %v831 = vand.u32 %v82, 4294901760
    %832 = vmatmul.mubr.f32.gmra.mrb[0].mxu0 %v831
    %v833 = vpop.f32.mrb[0].mxu0
    %v834 = vadd.f32 %v738, %v833
    %v835 = vpop.f32.mrb[0].mxu0
    %v836 = vand.u32 %v115, 4294901760
    %837 = vmatprep.mubr.f32.mxu0 %v836
    %v838 = vand.u32 %v84, 4294901760
    %839 = vmatmul.mubr.f32.gmra.mrb[0].mxu0 %v838
    %v840 = vpop.f32.mrb[0].mxu0
    %v841 = vadd.f32 %v745, %v840
    %v842 = vpop.f32.mrb[0].mxu0
    %843 = vdwg.mxu0
    %v844 = vmax.f32 %v834, 0.0
    %v845 = vmax.f32 %v841, 0.0
    %v846 = vld [vmem:[#allocation7] sm:$0xff]
    %v847 = vld [vmem:[#allocation7 + $0x8] sm:$0xff]
    %v848 = vld [vmem:[#allocation7 + $0x10] sm:$0xff]
    %v849 = vld [vmem:[#allocation7 + $0x18] sm:$0xff]
    %v850 = vld [vmem:[#allocation7 + $0x20] sm:$0xff]
    %v851 = vld [vmem:[#allocation7 + $0x28] sm:$0xff]
    %v852 = vld [vmem:[#allocation7 + $0x30] sm:$0xff]
    %v853 = vld [vmem:[#allocation7 + $0x38] sm:$0xff]
    %v854 = vld [vmem:[#allocation7 + $0x40] sm:$0xff]
    %v855 = vld [vmem:[#allocation7 + $0x48] sm:$0xff]
    %v856 = vld [vmem:[#allocation7 + $0x50] sm:$0xff]
    %v857 = vld [vmem:[#allocation7 + $0x58] sm:$0xff]
    %v858 = vld [vmem:[#allocation7 + $0x60] sm:$0xff]
    %v859 = vld [vmem:[#allocation7 + $0x68] sm:$0xff]
    %v860 = vld [vmem:[#allocation7 + $0x70] sm:$0xff]
    %v861 = vld [vmem:[#allocation7 + $0x78] sm:$0xff]
    %v862 = vld [vmem:[%s4] sm:$0x1]
    %v864 = vlaneseq
    %v865 = vshrl.u32 %v864, 7
    %v866 = vsub.s32 0, %v865
    %v867 = vrot.slane %v862, %v866
    %869 = vmatprep.subr.mxu0 0.0
    %v870 = vand.u32 %v846, 4294901760
    %871 = vmatpush1.msra.mxu0 %v870
    %872 = vmatprep.subr.mxu0 0.0
    %v873 = vand.u32 %v847, 4294901760
    %874 = vmatpush1.msra.mxu0 %v873
    %875 = vmatprep.subr.mxu0 0.0
    %v876 = vand.u32 %v848, 4294901760
    %877 = vmatpush1.msra.mxu0 %v876
    %878 = vmatprep.subr.mxu0 0.0
    %v879 = vand.u32 %v849, 4294901760
    %880 = vmatpush1.msra.mxu0 %v879
    %881 = vmatprep.subr.mxu0 0.0
    %v882 = vand.u32 %v850, 4294901760
    %883 = vmatpush1.msra.mxu0 %v882
    %884 = vmatprep.subr.mxu0 0.0
    %v885 = vand.u32 %v851, 4294901760
    %886 = vmatpush1.msra.mxu0 %v885
    %887 = vmatprep.subr.mxu0 0.0
    %v888 = vand.u32 %v852, 4294901760
    %889 = vmatpush1.msra.mxu0 %v888
    %890 = vmatprep.subr.mxu0 0.0
    %v891 = vand.u32 %v853, 4294901760
    %892 = vmatpush1.msra.mxu0 %v891
    %893 = vmatprep.subr.mxu0 0.0
    %v894 = vand.u32 %v854, 4294901760
    %895 = vmatpush1.msra.mxu0 %v894
    %896 = vmatprep.subr.mxu0 0.0
    %v897 = vand.u32 %v855, 4294901760
    %898 = vmatpush1.msra.mxu0 %v897
    %899 = vmatprep.subr.mxu0 0.0
    %v900 = vand.u32 %v856, 4294901760
    %901 = vmatpush1.msra.mxu0 %v900
    %902 = vmatprep.subr.mxu0 0.0
    %v903 = vand.u32 %v857, 4294901760
    %904 = vmatpush1.msra.mxu0 %v903
    %905 = vmatprep.subr.mxu0 0.0
    %v906 = vand.u32 %v858, 4294901760
    %907 = vmatpush1.msra.mxu0 %v906
    %908 = vmatprep.subr.mxu0 0.0
    %v909 = vand.u32 %v859, 4294901760
    %910 = vmatpush1.msra.mxu0 %v909
    %911 = vmatprep.subr.mxu0 0.0
    %v912 = vand.u32 %v860, 4294901760
    %913 = vmatpush1.msra.mxu0 %v912
    %914 = vmatprep.subr.mxu0 0.0
    %v915 = vand.u32 %v861, 4294901760
    %916 = vmatpush1.msra.mxu0 %v915
    %917 = vmatprep.subr.mxu0 0.0
    %918 = vmatpush1.msra.mxu0 0.0
    %919 = vmatprep.subr.mxu0 0.0
    %920 = vmatpush1.msra.mxu0 0.0
    %921 = vmatprep.subr.mxu0 0.0
    %922 = vmatpush1.msra.mxu0 0.0
    %923 = vmatprep.subr.mxu0 0.0
    %924 = vmatpush1.msra.mxu0 0.0
    %925 = vmatprep.subr.mxu0 0.0
    %926 = vmatpush1.msra.mxu0 0.0
    %927 = vmatprep.subr.mxu0 0.0
    %928 = vmatpush1.msra.mxu0 0.0
    %929 = vmatprep.subr.mxu0 0.0
    %930 = vmatpush1.msra.mxu0 0.0
    %931 = vmatprep.subr.mxu0 0.0
    %932 = vmatpush1.msra.mxu0 0.0
    %933 = vmatprep.subr.mxu0 0.0
    %934 = vmatpush1.msra.mxu0 0.0
    %935 = vmatprep.subr.mxu0 0.0
    %936 = vmatpush1.msra.mxu0 0.0
    %937 = vmatprep.subr.mxu0 0.0
    %938 = vmatpush1.msra.mxu0 0.0
    %939 = vmatprep.subr.mxu0 0.0
    %940 = vmatpush1.msra.mxu0 0.0
    %941 = vmatprep.subr.mxu0 0.0
    %942 = vmatpush1.msra.mxu0 0.0
    %943 = vmatprep.subr.mxu0 0.0
    %944 = vmatpush1.msra.mxu0 0.0
    %945 = vmatprep.subr.mxu0 0.0
    %946 = vmatpush1.msra.mxu0 0.0
    %947 = vmatprep.subr.mxu0 0.0
    %948 = vmatpush1.msra.mxu0 0.0
    %949 = vmatprep.mubr.f32.mxu0 0.0
    %v950 = vand.u32 %v844, 4294901760
    %v951 = vsub.f32 %v844, %v950
    %v952 = vand.u32 %v951, 4294901760
    %v953 = vsub.f32 %v951, %v952
    %v954 = vand.u32 %v953, 4294901760
    %955 = vmatmul.mubr.f32.gmra.mrb[0].mxu0 %v954
    %v956 = vpop.f32.mrb[0].mxu0
    %v957 = vadd.f32 %v867, %v956
    %v958 = vpop.f32.mrb[0].mxu0
    %959 = vmatprep.mubr.f32.mxu0 0.0
    %v960 = vand.u32 %v845, 4294901760
    %v961 = vsub.f32 %v845, %v960
    %v962 = vand.u32 %v961, 4294901760
    %v963 = vsub.f32 %v961, %v962
    %v964 = vand.u32 %v963, 4294901760
    %965 = vmatmul.mubr.f32.gmra.mrb[0].mxu0 %v964
    %v966 = vpop.f32.mrb[0].mxu0
    %v967 = vadd.f32 %v867, %v966
    %v968 = vpop.f32.mrb[0].mxu0
    %969 = vdwg.mxu0
    %970 = vmatprep.subr.mxu0 0.0
    %v971 = vand.u32 %v846, 4294901760
    %v972 = vsub.f32 %v846, %v971
    %v973 = vand.u32 %v972, 4294901760
    %v974 = vsub.f32 %v972, %v973
    %v975 = vand.u32 %v974, 4294901760
    %976 = vmatpush1.msra.mxu0 %v975
    %977 = vmatprep.subr.mxu0 0.0
    %v978 = vand.u32 %v847, 4294901760
    %v979 = vsub.f32 %v847, %v978
    %v980 = vand.u32 %v979, 4294901760
    %v981 = vsub.f32 %v979, %v980
    %v982 = vand.u32 %v981, 4294901760
    %983 = vmatpush1.msra.mxu0 %v982
    %984 = vmatprep.subr.mxu0 0.0
    %v985 = vand.u32 %v848, 4294901760
    %v986 = vsub.f32 %v848, %v985
    %v987 = vand.u32 %v986, 4294901760
    %v988 = vsub.f32 %v986, %v987
    %v989 = vand.u32 %v988, 4294901760
    %990 = vmatpush1.msra.mxu0 %v989
    %991 = vmatprep.subr.mxu0 0.0
    %v992 = vand.u32 %v849, 4294901760
    %v993 = vsub.f32 %v849, %v992
    %v994 = vand.u32 %v993, 4294901760
    %v995 = vsub.f32 %v993, %v994
    %v996 = vand.u32 %v995, 4294901760
    %997 = vmatpush1.msra.mxu0 %v996
    %998 = vmatprep.subr.mxu0 0.0
    %v999 = vand.u32 %v850, 4294901760
    %v1000 = vsub.f32 %v850, %v999
    %v1001 = vand.u32 %v1000, 4294901760
    %v1002 = vsub.f32 %v1000, %v1001
    %v1003 = vand.u32 %v1002, 4294901760
    %1004 = vmatpush1.msra.mxu0 %v1003
    %1005 = vmatprep.subr.mxu0 0.0
    %v1006 = vand.u32 %v851, 4294901760
    %v1007 = vsub.f32 %v851, %v1006
    %v1008 = vand.u32 %v1007, 4294901760
    %v1009 = vsub.f32 %v1007, %v1008
    %v1010 = vand.u32 %v1009, 4294901760
    %1011 = vmatpush1.msra.mxu0 %v1010
    %1012 = vmatprep.subr.mxu0 0.0
    %v1013 = vand.u32 %v852, 4294901760
    %v1014 = vsub.f32 %v852, %v1013
    %v1015 = vand.u32 %v1014, 4294901760
    %v1016 = vsub.f32 %v1014, %v1015
    %v1017 = vand.u32 %v1016, 4294901760
    %1018 = vmatpush1.msra.mxu0 %v1017
    %1019 = vmatprep.subr.mxu0 0.0
    %v1020 = vand.u32 %v853, 4294901760
    %v1021 = vsub.f32 %v853, %v1020
    %v1022 = vand.u32 %v1021, 4294901760
    %v1023 = vsub.f32 %v1021, %v1022
    %v1024 = vand.u32 %v1023, 4294901760
    %1025 = vmatpush1.msra.mxu0 %v1024
    %1026 = vmatprep.subr.mxu0 0.0
    %v1027 = vand.u32 %v854, 4294901760
    %v1028 = vsub.f32 %v854, %v1027
    %v1029 = vand.u32 %v1028, 4294901760
    %v1030 = vsub.f32 %v1028, %v1029
    %v1031 = vand.u32 %v1030, 4294901760
    %1032 = vmatpush1.msra.mxu0 %v1031
    %1033 = vmatprep.subr.mxu0 0.0
    %v1034 = vand.u32 %v855, 4294901760
    %v1035 = vsub.f32 %v855, %v1034
    %v1036 = vand.u32 %v1035, 4294901760
    %v1037 = vsub.f32 %v1035, %v1036
    %v1038 = vand.u32 %v1037, 4294901760
    %1039 = vmatpush1.msra.mxu0 %v1038
    %1040 = vmatprep.subr.mxu0 0.0
    %v1041 = vand.u32 %v856, 4294901760
    %v1042 = vsub.f32 %v856, %v1041
    %v1043 = vand.u32 %v1042, 4294901760
    %v1044 = vsub.f32 %v1042, %v1043
    %v1045 = vand.u32 %v1044, 4294901760
    %1046 = vmatpush1.msra.mxu0 %v1045
    %1047 = vmatprep.subr.mxu0 0.0
    %v1048 = vand.u32 %v857, 4294901760
    %v1049 = vsub.f32 %v857, %v1048
    %v1050 = vand.u32 %v1049, 4294901760
    %v1051 = vsub.f32 %v1049, %v1050
    %v1052 = vand.u32 %v1051, 4294901760
    %1053 = vmatpush1.msra.mxu0 %v1052
    %1054 = vmatprep.subr.mxu0 0.0
    %v1055 = vand.u32 %v858, 4294901760
    %v1056 = vsub.f32 %v858, %v1055
    %v1057 = vand.u32 %v1056, 4294901760
    %v1058 = vsub.f32 %v1056, %v1057
    %v1059 = vand.u32 %v1058, 4294901760
    %1060 = vmatpush1.msra.mxu0 %v1059
    %1061 = vmatprep.subr.mxu0 0.0
    %v1062 = vand.u32 %v859, 4294901760
    %v1063 = vsub.f32 %v859, %v1062
    %v1064 = vand.u32 %v1063, 4294901760
    %v1065 = vsub.f32 %v1063, %v1064
    %v1066 = vand.u32 %v1065, 4294901760
    %1067 = vmatpush1.msra.mxu0 %v1066
    %1068 = vmatprep.subr.mxu0 0.0
    %v1069 = vand.u32 %v860, 4294901760
    %v1070 = vsub.f32 %v860, %v1069
    %v1071 = vand.u32 %v1070, 4294901760
    %v1072 = vsub.f32 %v1070, %v1071
    %v1073 = vand.u32 %v1072, 4294901760
    %1074 = vmatpush1.msra.mxu0 %v1073
    %1075 = vmatprep.subr.mxu0 0.0
    %v1076 = vand.u32 %v861, 4294901760
    %v1077 = vsub.f32 %v861, %v1076
    %v1078 = vand.u32 %v1077, 4294901760
    %v1079 = vsub.f32 %v1077, %v1078
    %v1080 = vand.u32 %v1079, 4294901760
    %1081 = vmatpush1.msra.mxu0 %v1080
    %1082 = vmatprep.subr.mxu0 0.0
    %1083 = vmatpush1.msra.mxu0 0.0
    %1084 = vmatprep.subr.mxu0 0.0
    %1085 = vmatpush1.msra.mxu0 0.0
    %1086 = vmatprep.subr.mxu0 0.0
    %1087 = vmatpush1.msra.mxu0 0.0
    %1088 = vmatprep.subr.mxu0 0.0
    %1089 = vmatpush1.msra.mxu0 0.0
    %1090 = vmatprep.subr.mxu0 0.0
    %1091 = vmatpush1.msra.mxu0 0.0
    %1092 = vmatprep.subr.mxu0 0.0
    %1093 = vmatpush1.msra.mxu0 0.0
    %1094 = vmatprep.subr.mxu0 0.0
    %1095 = vmatpush1.msra.mxu0 0.0
    %1096 = vmatprep.subr.mxu0 0.0
    %1097 = vmatpush1.msra.mxu0 0.0
    %1098 = vmatprep.subr.mxu0 0.0
    %1099 = vmatpush1.msra.mxu0 0.0
    %1100 = vmatprep.subr.mxu0 0.0
    %1101 = vmatpush1.msra.mxu0 0.0
    %1102 = vmatprep.subr.mxu0 0.0
    %1103 = vmatpush1.msra.mxu0 0.0
    %1104 = vmatprep.subr.mxu0 0.0
    %1105 = vmatpush1.msra.mxu0 0.0
    %1106 = vmatprep.subr.mxu0 0.0
    %1107 = vmatpush1.msra.mxu0 0.0
    %1108 = vmatprep.subr.mxu0 0.0
    %1109 = vmatpush1.msra.mxu0 0.0
    %1110 = vmatprep.subr.mxu0 0.0
    %1111 = vmatpush1.msra.mxu0 0.0
    %1112 = vmatprep.subr.mxu0 0.0
    %1113 = vmatpush1.msra.mxu0 0.0
    %1114 = vmatprep.mubr.f32.mxu0 0.0
    %v1115 = vand.u32 %v844, 4294901760
    %1116 = vmatmul.mubr.f32.gmra.mrb[0].mxu0 %v1115
    %v1117 = vpop.f32.mrb[0].mxu0
    %v1118 = vadd.f32 %v957, %v1117
    %v1119 = vpop.f32.mrb[0].mxu0
    %1120 = vmatprep.mubr.f32.mxu0 0.0
    %v1121 = vand.u32 %v845, 4294901760
    %1122 = vmatmul.mubr.f32.gmra.mrb[0].mxu0 %v1121
    %v1123 = vpop.f32.mrb[0].mxu0
    %v1124 = vadd.f32 %v967, %v1123
    %v1125 = vpop.f32.mrb[0].mxu0
    %1126 = vdwg.mxu0
    %1127 = vmatprep.subr.mxu0 0.0
    %v1128 = vand.u32 %v846, 4294901760
    %v1129 = vsub.f32 %v846, %v1128
    %1130 = vmatpush1.msra.mxu0 %v1129
    %1131 = vmatprep.subr.mxu0 0.0
    %v1132 = vand.u32 %v847, 4294901760
    %v1133 = vsub.f32 %v847, %v1132
    %1134 = vmatpush1.msra.mxu0 %v1133
    %1135 = vmatprep.subr.mxu0 0.0
    %v1136 = vand.u32 %v848, 4294901760
    %v1137 = vsub.f32 %v848, %v1136
    %1138 = vmatpush1.msra.mxu0 %v1137
    %1139 = vmatprep.subr.mxu0 0.0
    %v1140 = vand.u32 %v849, 4294901760
    %v1141 = vsub.f32 %v849, %v1140
    %1142 = vmatpush1.msra.mxu0 %v1141
    %1143 = vmatprep.subr.mxu0 0.0
    %v1144 = vand.u32 %v850, 4294901760
    %v1145 = vsub.f32 %v850, %v1144
    %1146 = vmatpush1.msra.mxu0 %v1145
    %1147 = vmatprep.subr.mxu0 0.0
    %v1148 = vand.u32 %v851, 4294901760
    %v1149 = vsub.f32 %v851, %v1148
    %1150 = vmatpush1.msra.mxu0 %v1149
    %1151 = vmatprep.subr.mxu0 0.0
    %v1152 = vand.u32 %v852, 4294901760
    %v1153 = vsub.f32 %v852, %v1152
    %1154 = vmatpush1.msra.mxu0 %v1153
    %1155 = vmatprep.subr.mxu0 0.0
    %v1156 = vand.u32 %v853, 4294901760
    %v1157 = vsub.f32 %v853, %v1156
    %1158 = vmatpush1.msra.mxu0 %v1157
    %1159 = vmatprep.subr.mxu0 0.0
    %v1160 = vand.u32 %v854, 4294901760
    %v1161 = vsub.f32 %v854, %v1160
    %1162 = vmatpush1.msra.mxu0 %v1161
    %1163 = vmatprep.subr.mxu0 0.0
    %v1164 = vand.u32 %v855, 4294901760
    %v1165 = vsub.f32 %v855, %v1164
    %1166 = vmatpush1.msra.mxu0 %v1165
    %1167 = vmatprep.subr.mxu0 0.0
    %v1168 = vand.u32 %v856, 4294901760
    %v1169 = vsub.f32 %v856, %v1168
    %1170 = vmatpush1.msra.mxu0 %v1169
    %1171 = vmatprep.subr.mxu0 0.0
    %v1172 = vand.u32 %v857, 4294901760
    %v1173 = vsub.f32 %v857, %v1172
    %1174 = vmatpush1.msra.mxu0 %v1173
    %1175 = vmatprep.subr.mxu0 0.0
    %v1176 = vand.u32 %v858, 4294901760
    %v1177 = vsub.f32 %v858, %v1176
    %1178 = vmatpush1.msra.mxu0 %v1177
    %1179 = vmatprep.subr.mxu0 0.0
    %v1180 = vand.u32 %v859, 4294901760
    %v1181 = vsub.f32 %v859, %v1180
    %1182 = vmatpush1.msra.mxu0 %v1181
    %1183 = vmatprep.subr.mxu0 0.0
    %v1184 = vand.u32 %v860, 4294901760
    %v1185 = vsub.f32 %v860, %v1184
    %1186 = vmatpush1.msra.mxu0 %v1185
    %1187 = vmatprep.subr.mxu0 0.0
    %v1188 = vand.u32 %v861, 4294901760
    %v1189 = vsub.f32 %v861, %v1188
    %1190 = vmatpush1.msra.mxu0 %v1189
    %1191 = vmatprep.subr.mxu0 0.0
    %1192 = vmatpush1.msra.mxu0 0.0
    %1193 = vmatprep.subr.mxu0 0.0
    %1194 = vmatpush1.msra.mxu0 0.0
    %1195 = vmatprep.subr.mxu0 0.0
    %1196 = vmatpush1.msra.mxu0 0.0
    %1197 = vmatprep.subr.mxu0 0.0
    %1198 = vmatpush1.msra.mxu0 0.0
    %1199 = vmatprep.subr.mxu0 0.0
    %1200 = vmatpush1.msra.mxu0 0.0
    %1201 = vmatprep.subr.mxu0 0.0
    %1202 = vmatpush1.msra.mxu0 0.0
    %1203 = vmatprep.subr.mxu0 0.0
    %1204 = vmatpush1.msra.mxu0 0.0
    %1205 = vmatprep.subr.mxu0 0.0
    %1206 = vmatpush1.msra.mxu0 0.0
    %1207 = vmatprep.subr.mxu0 0.0
    %1208 = vmatpush1.msra.mxu0 0.0
    %1209 = vmatprep.subr.mxu0 0.0
    %1210 = vmatpush1.msra.mxu0 0.0
    %1211 = vmatprep.subr.mxu0 0.0
    %1212 = vmatpush1.msra.mxu0 0.0
    %1213 = vmatprep.subr.mxu0 0.0
    %1214 = vmatpush1.msra.mxu0 0.0
    %1215 = vmatprep.subr.mxu0 0.0
    %1216 = vmatpush1.msra.mxu0 0.0
    %1217 = vmatprep.subr.mxu0 0.0
    %1218 = vmatpush1.msra.mxu0 0.0
    %1219 = vmatprep.subr.mxu0 0.0
    %1220 = vmatpush1.msra.mxu0 0.0
    %1221 = vmatprep.subr.mxu0 0.0
    %1222 = vmatpush1.msra.mxu0 0.0
    %1223 = vmatprep.mubr.f32.mxu0 0.0
    %v1224 = vand.u32 %v844, 4294901760
    %v1225 = vsub.f32 %v844, %v1224
    %1226 = vmatmul.mubr.f32.gmra.mrb[0].mxu0 %v1225
    %v1227 = vpop.f32.mrb[0].mxu0
    %v1228 = vadd.f32 %v1118, %v1227
    %v1229 = vpop.f32.mrb[0].mxu0
    %1230 = vmatprep.mubr.f32.mxu0 0.0
    %v1231 = vand.u32 %v845, 4294901760
    %v1232 = vsub.f32 %v845, %v1231
    %1233 = vmatmul.mubr.f32.gmra.mrb[0].mxu0 %v1232
    %v1234 = vpop.f32.mrb[0].mxu0
    %v1235 = vadd.f32 %v1124, %v1234
    %v1236 = vpop.f32.mrb[0].mxu0
    %1237 = vdwg.mxu0
    %1238 = vmatprep.subr.mxu0 0.0
    %v1239 = vand.u32 %v846, 4294901760
    %1240 = vmatpush1.msra.mxu0 %v1239
    %1241 = vmatprep.subr.mxu0 0.0
    %v1242 = vand.u32 %v847, 4294901760
    %1243 = vmatpush1.msra.mxu0 %v1242
    %1244 = vmatprep.subr.mxu0 0.0
    %v1245 = vand.u32 %v848, 4294901760
    %1246 = vmatpush1.msra.mxu0 %v1245
    %1247 = vmatprep.subr.mxu0 0.0
    %v1248 = vand.u32 %v849, 4294901760
    %1249 = vmatpush1.msra.mxu0 %v1248
    %1250 = vmatprep.subr.mxu0 0.0
    %v1251 = vand.u32 %v850, 4294901760
    %1252 = vmatpush1.msra.mxu0 %v1251
    %1253 = vmatprep.subr.mxu0 0.0
    %v1254 = vand.u32 %v851, 4294901760
    %1255 = vmatpush1.msra.mxu0 %v1254
    %1256 = vmatprep.subr.mxu0 0.0
    %v1257 = vand.u32 %v852, 4294901760
    %1258 = vmatpush1.msra.mxu0 %v1257
    %1259 = vmatprep.subr.mxu0 0.0
    %v1260 = vand.u32 %v853, 4294901760
    %1261 = vmatpush1.msra.mxu0 %v1260
    %1262 = vmatprep.subr.mxu0 0.0
    %v1263 = vand.u32 %v854, 4294901760
    %1264 = vmatpush1.msra.mxu0 %v1263
    %1265 = vmatprep.subr.mxu0 0.0
    %v1266 = vand.u32 %v855, 4294901760
    %1267 = vmatpush1.msra.mxu0 %v1266
    %1268 = vmatprep.subr.mxu0 0.0
    %v1269 = vand.u32 %v856, 4294901760
    %1270 = vmatpush1.msra.mxu0 %v1269
    %1271 = vmatprep.subr.mxu0 0.0
    %v1272 = vand.u32 %v857, 4294901760
    %1273 = vmatpush1.msra.mxu0 %v1272
    %1274 = vmatprep.subr.mxu0 0.0
    %v1275 = vand.u32 %v858, 4294901760
    %1276 = vmatpush1.msra.mxu0 %v1275
    %1277 = vmatprep.subr.mxu0 0.0
    %v1278 = vand.u32 %v859, 4294901760
    %1279 = vmatpush1.msra.mxu0 %v1278
    %1280 = vmatprep.subr.mxu0 0.0
    %v1281 = vand.u32 %v860, 4294901760
    %1282 = vmatpush1.msra.mxu0 %v1281
    %1283 = vmatprep.subr.mxu0 0.0
    %v1284 = vand.u32 %v861, 4294901760
    %1285 = vmatpush1.msra.mxu0 %v1284
    %1286 = vmatprep.subr.mxu0 0.0
    %1287 = vmatpush1.msra.mxu0 0.0
    %1288 = vmatprep.subr.mxu0 0.0
    %1289 = vmatpush1.msra.mxu0 0.0
    %1290 = vmatprep.subr.mxu0 0.0
    %1291 = vmatpush1.msra.mxu0 0.0
    %1292 = vmatprep.subr.mxu0 0.0
    %1293 = vmatpush1.msra.mxu0 0.0
    %1294 = vmatprep.subr.mxu0 0.0
    %1295 = vmatpush1.msra.mxu0 0.0
    %1296 = vmatprep.subr.mxu0 0.0
    %1297 = vmatpush1.msra.mxu0 0.0
    %1298 = vmatprep.subr.mxu0 0.0
    %1299 = vmatpush1.msra.mxu0 0.0
    %1300 = vmatprep.subr.mxu0 0.0
    %1301 = vmatpush1.msra.mxu0 0.0
    %1302 = vmatprep.subr.mxu0 0.0
    %1303 = vmatpush1.msra.mxu0 0.0
    %1304 = vmatprep.subr.mxu0 0.0
    %1305 = vmatpush1.msra.mxu0 0.0
    %1306 = vmatprep.subr.mxu0 0.0
    %1307 = vmatpush1.msra.mxu0 0.0
    %1308 = vmatprep.subr.mxu0 0.0
    %1309 = vmatpush1.msra.mxu0 0.0
    %1310 = vmatprep.subr.mxu0 0.0
    %1311 = vmatpush1.msra.mxu0 0.0
    %1312 = vmatprep.subr.mxu0 0.0
    %1313 = vmatpush1.msra.mxu0 0.0
    %1314 = vmatprep.subr.mxu0 0.0
    %1315 = vmatpush1.msra.mxu0 0.0
    %1316 = vmatprep.subr.mxu0 0.0
    %1317 = vmatpush1.msra.mxu0 0.0
    %1318 = vmatprep.mubr.f32.mxu0 0.0
    %v1319 = vand.u32 %v844, 4294901760
    %v1320 = vsub.f32 %v844, %v1319
    %v1321 = vand.u32 %v1320, 4294901760
    %1322 = vmatmul.mubr.f32.gmra.mrb[0].mxu0 %v1321
    %v1323 = vpop.f32.mrb[0].mxu0
    %v1324 = vadd.f32 %v1228, %v1323
    %v1325 = vpop.f32.mrb[0].mxu0
    %1326 = vmatprep.mubr.f32.mxu0 0.0
    %v1327 = vand.u32 %v845, 4294901760
    %v1328 = vsub.f32 %v845, %v1327
    %v1329 = vand.u32 %v1328, 4294901760
    %1330 = vmatmul.mubr.f32.gmra.mrb[0].mxu0 %v1329
    %v1331 = vpop.f32.mrb[0].mxu0
    %v1332 = vadd.f32 %v1235, %v1331
    %v1333 = vpop.f32.mrb[0].mxu0
    %1334 = vdwg.mxu0
    %1335 = vmatprep.subr.mxu0 0.0
    %v1336 = vand.u32 %v846, 4294901760
    %v1337 = vsub.f32 %v846, %v1336
    %v1338 = vand.u32 %v1337, 4294901760
    %1339 = vmatpush1.msra.mxu0 %v1338
    %1340 = vmatprep.subr.mxu0 0.0
    %v1341 = vand.u32 %v847, 4294901760
    %v1342 = vsub.f32 %v847, %v1341
    %v1343 = vand.u32 %v1342, 4294901760
    %1344 = vmatpush1.msra.mxu0 %v1343
    %1345 = vmatprep.subr.mxu0 0.0
    %v1346 = vand.u32 %v848, 4294901760
    %v1347 = vsub.f32 %v848, %v1346
    %v1348 = vand.u32 %v1347, 4294901760
    %1349 = vmatpush1.msra.mxu0 %v1348
    %1350 = vmatprep.subr.mxu0 0.0
    %v1351 = vand.u32 %v849, 4294901760
    %v1352 = vsub.f32 %v849, %v1351
    %v1353 = vand.u32 %v1352, 4294901760
    %1354 = vmatpush1.msra.mxu0 %v1353
    %1355 = vmatprep.subr.mxu0 0.0
    %v1356 = vand.u32 %v850, 4294901760
    %v1357 = vsub.f32 %v850, %v1356
    %v1358 = vand.u32 %v1357, 4294901760
    %1359 = vmatpush1.msra.mxu0 %v1358
    %1360 = vmatprep.subr.mxu0 0.0
    %v1361 = vand.u32 %v851, 4294901760
    %v1362 = vsub.f32 %v851, %v1361
    %v1363 = vand.u32 %v1362, 4294901760
    %1364 = vmatpush1.msra.mxu0 %v1363
    %1365 = vmatprep.subr.mxu0 0.0
    %v1366 = vand.u32 %v852, 4294901760
    %v1367 = vsub.f32 %v852, %v1366
    %v1368 = vand.u32 %v1367, 4294901760
    %1369 = vmatpush1.msra.mxu0 %v1368
    %1370 = vmatprep.subr.mxu0 0.0
    %v1371 = vand.u32 %v853, 4294901760
    %v1372 = vsub.f32 %v853, %v1371
    %v1373 = vand.u32 %v1372, 4294901760
    %1374 = vmatpush1.msra.mxu0 %v1373
    %1375 = vmatprep.subr.mxu0 0.0
    %v1376 = vand.u32 %v854, 4294901760
    %v1377 = vsub.f32 %v854, %v1376
    %v1378 = vand.u32 %v1377, 4294901760
    %1379 = vmatpush1.msra.mxu0 %v1378
    %1380 = vmatprep.subr.mxu0 0.0
    %v1381 = vand.u32 %v855, 4294901760
    %v1382 = vsub.f32 %v855, %v1381
    %v1383 = vand.u32 %v1382, 4294901760
    %1384 = vmatpush1.msra.mxu0 %v1383
    %1385 = vmatprep.subr.mxu0 0.0
    %v1386 = vand.u32 %v856, 4294901760
    %v1387 = vsub.f32 %v856, %v1386
    %v1388 = vand.u32 %v1387, 4294901760
    %1389 = vmatpush1.msra.mxu0 %v1388
    %1390 = vmatprep.subr.mxu0 0.0
    %v1391 = vand.u32 %v857, 4294901760
    %v1392 = vsub.f32 %v857, %v1391
    %v1393 = vand.u32 %v1392, 4294901760
    %1394 = vmatpush1.msra.mxu0 %v1393
    %1395 = vmatprep.subr.mxu0 0.0
    %v1396 = vand.u32 %v858, 4294901760
    %v1397 = vsub.f32 %v858, %v1396
    %v1398 = vand.u32 %v1397, 4294901760
    %1399 = vmatpush1.msra.mxu0 %v1398
    %1400 = vmatprep.subr.mxu0 0.0
    %v1401 = vand.u32 %v859, 4294901760
    %v1402 = vsub.f32 %v859, %v1401
    %v1403 = vand.u32 %v1402, 4294901760
    %1404 = vmatpush1.msra.mxu0 %v1403
    %1405 = vmatprep.subr.mxu0 0.0
    %v1406 = vand.u32 %v860, 4294901760
    %v1407 = vsub.f32 %v860, %v1406
    %v1408 = vand.u32 %v1407, 4294901760
    %1409 = vmatpush1.msra.mxu0 %v1408
    %1410 = vmatprep.subr.mxu0 0.0
    %v1411 = vand.u32 %v861, 4294901760
    %v1412 = vsub.f32 %v861, %v1411
    %v1413 = vand.u32 %v1412, 4294901760
    %1414 = vmatpush1.msra.mxu0 %v1413
    %1415 = vmatprep.subr.mxu0 0.0
    %1416 = vmatpush1.msra.mxu0 0.0
    %1417 = vmatprep.subr.mxu0 0.0
    %1418 = vmatpush1.msra.mxu0 0.0
    %1419 = vmatprep.subr.mxu0 0.0
    %1420 = vmatpush1.msra.mxu0 0.0
    %1421 = vmatprep.subr.mxu0 0.0
    %1422 = vmatpush1.msra.mxu0 0.0
    %1423 = vmatprep.subr.mxu0 0.0
    %1424 = vmatpush1.msra.mxu0 0.0
    %1425 = vmatprep.subr.mxu0 0.0
    %1426 = vmatpush1.msra.mxu0 0.0
    %1427 = vmatprep.subr.mxu0 0.0
    %1428 = vmatpush1.msra.mxu0 0.0
    %1429 = vmatprep.subr.mxu0 0.0
    %1430 = vmatpush1.msra.mxu0 0.0
    %1431 = vmatprep.subr.mxu0 0.0
    %1432 = vmatpush1.msra.mxu0 0.0
    %1433 = vmatprep.subr.mxu0 0.0
    %1434 = vmatpush1.msra.mxu0 0.0
    %1435 = vmatprep.subr.mxu0 0.0
    %1436 = vmatpush1.msra.mxu0 0.0
    %1437 = vmatprep.subr.mxu0 0.0
    %1438 = vmatpush1.msra.mxu0 0.0
    %1439 = vmatprep.subr.mxu0 0.0
    %1440 = vmatpush1.msra.mxu0 0.0
    %1441 = vmatprep.subr.mxu0 0.0
    %1442 = vmatpush1.msra.mxu0 0.0
    %1443 = vmatprep.subr.mxu0 0.0
    %1444 = vmatpush1.msra.mxu0 0.0
    %1445 = vmatprep.subr.mxu0 0.0
    %1446 = vmatpush1.msra.mxu0 0.0
    %1447 = vmatprep.mubr.f32.mxu0 0.0
    %v1448 = vand.u32 %v844, 4294901760
    %1449 = vmatmul.mubr.f32.gmra.mrb[0].mxu0 %v1448
    %v1450 = vpop.f32.mrb[0].mxu0
    %v1451 = vadd.f32 %v1324, %v1450
    %v1452 = vpop.f32.mrb[0].mxu0
    %1453 = vmatprep.mubr.f32.mxu0 0.0
    %v1454 = vand.u32 %v845, 4294901760
    %1455 = vmatmul.mubr.f32.gmra.mrb[0].mxu0 %v1454
    %v1456 = vpop.f32.mrb[0].mxu0
    %v1457 = vadd.f32 %v1332, %v1456
    %v1458 = vpop.f32.mrb[0].mxu0
    %1459 = vdwg.mxu0
    %1460 = vmatprep.subr.mxu0 0.0
    %v1461 = vand.u32 %v846, 4294901760
    %1462 = vmatpush1.msra.mxu0 %v1461
    %1463 = vmatprep.subr.mxu0 0.0
    %v1464 = vand.u32 %v847, 4294901760
    %1465 = vmatpush1.msra.mxu0 %v1464
    %1466 = vmatprep.subr.mxu0 0.0
    %v1467 = vand.u32 %v848, 4294901760
    %1468 = vmatpush1.msra.mxu0 %v1467
    %1469 = vmatprep.subr.mxu0 0.0
    %v1470 = vand.u32 %v849, 4294901760
    %1471 = vmatpush1.msra.mxu0 %v1470
    %1472 = vmatprep.subr.mxu0 0.0
    %v1473 = vand.u32 %v850, 4294901760
    %1474 = vmatpush1.msra.mxu0 %v1473
    %1475 = vmatprep.subr.mxu0 0.0
    %v1476 = vand.u32 %v851, 4294901760
    %1477 = vmatpush1.msra.mxu0 %v1476
    %1478 = vmatprep.subr.mxu0 0.0
    %v1479 = vand.u32 %v852, 4294901760
    %1480 = vmatpush1.msra.mxu0 %v1479
    %1481 = vmatprep.subr.mxu0 0.0
    %v1482 = vand.u32 %v853, 4294901760
    %1483 = vmatpush1.msra.mxu0 %v1482
    %1484 = vmatprep.subr.mxu0 0.0
    %v1485 = vand.u32 %v854, 4294901760
    %1486 = vmatpush1.msra.mxu0 %v1485
    %1487 = vmatprep.subr.mxu0 0.0
    %v1488 = vand.u32 %v855, 4294901760
    %1489 = vmatpush1.msra.mxu0 %v1488
    %1490 = vmatprep.subr.mxu0 0.0
    %v1491 = vand.u32 %v856, 4294901760
    %1492 = vmatpush1.msra.mxu0 %v1491
    %1493 = vmatprep.subr.mxu0 0.0
    %v1494 = vand.u32 %v857, 4294901760
    %1495 = vmatpush1.msra.mxu0 %v1494
    %1496 = vmatprep.subr.mxu0 0.0
    %v1497 = vand.u32 %v858, 4294901760
    %1498 = vmatpush1.msra.mxu0 %v1497
    %1499 = vmatprep.subr.mxu0 0.0
    %v1500 = vand.u32 %v859, 4294901760
    %1501 = vmatpush1.msra.mxu0 %v1500
    %1502 = vmatprep.subr.mxu0 0.0
    %v1503 = vand.u32 %v860, 4294901760
    %1504 = vmatpush1.msra.mxu0 %v1503
    %1505 = vmatprep.subr.mxu0 0.0
    %v1506 = vand.u32 %v861, 4294901760
    %1507 = vmatpush1.msra.mxu0 %v1506
    %1508 = vmatprep.subr.mxu0 0.0
    %1509 = vmatpush1.msra.mxu0 0.0
    %1510 = vmatprep.subr.mxu0 0.0
    %1511 = vmatpush1.msra.mxu0 0.0
    %1512 = vmatprep.subr.mxu0 0.0
    %1513 = vmatpush1.msra.mxu0 0.0
    %1514 = vmatprep.subr.mxu0 0.0
    %1515 = vmatpush1.msra.mxu0 0.0
    %1516 = vmatprep.subr.mxu0 0.0
    %1517 = vmatpush1.msra.mxu0 0.0
    %1518 = vmatprep.subr.mxu0 0.0
    %1519 = vmatpush1.msra.mxu0 0.0
    %1520 = vmatprep.subr.mxu0 0.0
    %1521 = vmatpush1.msra.mxu0 0.0
    %1522 = vmatprep.subr.mxu0 0.0
    %1523 = vmatpush1.msra.mxu0 0.0
    %1524 = vmatprep.subr.mxu0 0.0
    %1525 = vmatpush1.msra.mxu0 0.0
    %1526 = vmatprep.subr.mxu0 0.0
    %1527 = vmatpush1.msra.mxu0 0.0
    %1528 = vmatprep.subr.mxu0 0.0
    %1529 = vmatpush1.msra.mxu0 0.0
    %1530 = vmatprep.subr.mxu0 0.0
    %1531 = vmatpush1.msra.mxu0 0.0
    %1532 = vmatprep.subr.mxu0 0.0
    %1533 = vmatpush1.msra.mxu0 0.0
    %1534 = vmatprep.subr.mxu0 0.0
    %1535 = vmatpush1.msra.mxu0 0.0
    %1536 = vmatprep.subr.mxu0 0.0
    %1537 = vmatpush1.msra.mxu0 0.0
    %1538 = vmatprep.subr.mxu0 0.0
    %1539 = vmatpush1.msra.mxu0 0.0
    %1540 = vmatprep.mubr.f32.mxu0 0.0
    %v1541 = vand.u32 %v844, 4294901760
    %1542 = vmatmul.mubr.f32.gmra.mrb[0].mxu0 %v1541
    %v1543 = vpop.f32.mrb[0].mxu0
    %v1544 = vadd.f32 %v1451, %v1543
    %v1545 = vpop.f32.mrb[0].mxu0
    %1546 = vmatprep.mubr.f32.mxu0 0.0
    %v1547 = vand.u32 %v845, 4294901760
    %1548 = vmatmul.mubr.f32.gmra.mrb[0].mxu0 %v1547
    %v1549 = vpop.f32.mrb[0].mxu0
    %v1550 = vadd.f32 %v1457, %v1549
    %v1551 = vpop.f32.mrb[0].mxu0
    %1552 = vdwg.mxu0
    %v1553 = vmax.f32 %v1544, 0.0
    %v1554 = vmax.f32 %v1550, 0.0
    %v1555 = vld [vmem:[#allocation8] sm:$0xff]
    %v1556 = vld [vmem:[#allocation8 + $0x8] sm:$0xff]
    %v1557 = vld [vmem:[#allocation8 + $0x10] sm:$0xff]
    %v1558 = vld [vmem:[#allocation8 + $0x18] sm:$0xff]
    %v1559 = vld [vmem:[#allocation8 + $0x20] sm:$0xff]
    %v1560 = vld [vmem:[#allocation8 + $0x28] sm:$0xff]
    %v1561 = vld [vmem:[#allocation8 + $0x30] sm:$0xff]
    %v1562 = vld [vmem:[#allocation8 + $0x38] sm:$0xff]
    %v1563 = vld [vmem:[#allocation8 + $0x40] sm:$0xff]
    %v1564 = vld [vmem:[#allocation8 + $0x48] sm:$0xff]
    %v1565 = vld [vmem:[#allocation8 + $0x50] sm:$0xff]
    %v1566 = vld [vmem:[#allocation8 + $0x58] sm:$0xff]
    %v1567 = vld [vmem:[#allocation8 + $0x60] sm:$0xff]
    %v1568 = vld [vmem:[#allocation8 + $0x68] sm:$0xff]
    %v1569 = vld [vmem:[#allocation8 + $0x70] sm:$0xff]
    %v1570 = vld [vmem:[#allocation8 + $0x78] sm:$0xff]
    %v1571 = vld [vmem:[%s6] sm:$0x1]
    %v1573 = vlaneseq
    %v1574 = vshrl.u32 %v1573, 7
    %v1575 = vsub.s32 0, %v1574
    %v1576 = vrot.slane %v1571, %v1575
    %1578 = vmatprep.subr.mxu0 0.0
    %v1579 = vand.u32 %v1555, 4294901760
    %1580 = vmatpush1.msra.mxu0 %v1579
    %1581 = vmatprep.subr.mxu0 0.0
    %v1582 = vand.u32 %v1556, 4294901760
    %1583 = vmatpush1.msra.mxu0 %v1582
    %1584 = vmatprep.subr.mxu0 0.0
    %v1585 = vand.u32 %v1557, 4294901760
    %1586 = vmatpush1.msra.mxu0 %v1585
    %1587 = vmatprep.subr.mxu0 0.0
    %v1588 = vand.u32 %v1558, 4294901760
    %1589 = vmatpush1.msra.mxu0 %v1588
    %1590 = vmatprep.subr.mxu0 0.0
    %v1591 = vand.u32 %v1559, 4294901760
    %1592 = vmatpush1.msra.mxu0 %v1591
    %1593 = vmatprep.subr.mxu0 0.0
    %v1594 = vand.u32 %v1560, 4294901760
    %1595 = vmatpush1.msra.mxu0 %v1594
    %1596 = vmatprep.subr.mxu0 0.0
    %v1597 = vand.u32 %v1561, 4294901760
    %1598 = vmatpush1.msra.mxu0 %v1597
    %1599 = vmatprep.subr.mxu0 0.0
    %v1600 = vand.u32 %v1562, 4294901760
    %1601 = vmatpush1.msra.mxu0 %v1600
    %1602 = vmatprep.subr.mxu0 0.0
    %v1603 = vand.u32 %v1563, 4294901760
    %1604 = vmatpush1.msra.mxu0 %v1603
    %1605 = vmatprep.subr.mxu0 0.0
    %v1606 = vand.u32 %v1564, 4294901760
    %1607 = vmatpush1.msra.mxu0 %v1606
    %1608 = vmatprep.subr.mxu0 0.0
    %v1609 = vand.u32 %v1565, 4294901760
    %1610 = vmatpush1.msra.mxu0 %v1609
    %1611 = vmatprep.subr.mxu0 0.0
    %v1612 = vand.u32 %v1566, 4294901760
    %1613 = vmatpush1.msra.mxu0 %v1612
    %1614 = vmatprep.subr.mxu0 0.0
    %v1615 = vand.u32 %v1567, 4294901760
    %1616 = vmatpush1.msra.mxu0 %v1615
    %1617 = vmatprep.subr.mxu0 0.0
    %v1618 = vand.u32 %v1568, 4294901760
    %1619 = vmatpush1.msra.mxu0 %v1618
    %1620 = vmatprep.subr.mxu0 0.0
    %v1621 = vand.u32 %v1569, 4294901760
    %1622 = vmatpush1.msra.mxu0 %v1621
    %1623 = vmatprep.subr.mxu0 0.0
    %v1624 = vand.u32 %v1570, 4294901760
    %1625 = vmatpush1.msra.mxu0 %v1624
    %1626 = vmatprep.subr.mxu0 0.0
    %1627 = vmatpush1.msra.mxu0 0.0
    %1628 = vmatprep.subr.mxu0 0.0
    %1629 = vmatpush1.msra.mxu0 0.0
    %1630 = vmatprep.subr.mxu0 0.0
    %1631 = vmatpush1.msra.mxu0 0.0
    %1632 = vmatprep.subr.mxu0 0.0
    %1633 = vmatpush1.msra.mxu0 0.0
    %1634 = vmatprep.subr.mxu0 0.0
    %1635 = vmatpush1.msra.mxu0 0.0
    %1636 = vmatprep.subr.mxu0 0.0
    %1637 = vmatpush1.msra.mxu0 0.0
    %1638 = vmatprep.subr.mxu0 0.0
    %1639 = vmatpush1.msra.mxu0 0.0
    %1640 = vmatprep.subr.mxu0 0.0
    %1641 = vmatpush1.msra.mxu0 0.0
    %1642 = vmatprep.subr.mxu0 0.0
    %1643 = vmatpush1.msra.mxu0 0.0
    %1644 = vmatprep.subr.mxu0 0.0
    %1645 = vmatpush1.msra.mxu0 0.0
    %1646 = vmatprep.subr.mxu0 0.0
    %1647 = vmatpush1.msra.mxu0 0.0
    %1648 = vmatprep.subr.mxu0 0.0
    %1649 = vmatpush1.msra.mxu0 0.0
    %1650 = vmatprep.subr.mxu0 0.0
    %1651 = vmatpush1.msra.mxu0 0.0
    %1652 = vmatprep.subr.mxu0 0.0
    %1653 = vmatpush1.msra.mxu0 0.0
    %1654 = vmatprep.subr.mxu0 0.0
    %1655 = vmatpush1.msra.mxu0 0.0
    %1656 = vmatprep.subr.mxu0 0.0
    %1657 = vmatpush1.msra.mxu0 0.0
    %1658 = vmatprep.mubr.f32.mxu0 0.0
    %v1659 = vand.u32 %v1553, 4294901760
    %v1660 = vsub.f32 %v1553, %v1659
    %v1661 = vand.u32 %v1660, 4294901760
    %v1662 = vsub.f32 %v1660, %v1661
    %v1663 = vand.u32 %v1662, 4294901760
    %1664 = vmatmul.mubr.f32.gmra.mrb[0].mxu0 %v1663
    %v1665 = vpop.f32.mrb[0].mxu0
    %v1666 = vadd.f32 %v1576, %v1665
    %v1667 = vpop.f32.mrb[0].mxu0
    %1668 = vmatprep.mubr.f32.mxu0 0.0
    %v1669 = vand.u32 %v1554, 4294901760
    %v1670 = vsub.f32 %v1554, %v1669
    %v1671 = vand.u32 %v1670, 4294901760
    %v1672 = vsub.f32 %v1670, %v1671
    %v1673 = vand.u32 %v1672, 4294901760
    %1674 = vmatmul.mubr.f32.gmra.mrb[0].mxu0 %v1673
    %v1675 = vpop.f32.mrb[0].mxu0
    %v1676 = vadd.f32 %v1576, %v1675
    %v1677 = vpop.f32.mrb[0].mxu0
    %1678 = vdwg.mxu0
    %1679 = vmatprep.subr.mxu0 0.0
    %v1680 = vand.u32 %v1555, 4294901760
    %v1681 = vsub.f32 %v1555, %v1680
    %v1682 = vand.u32 %v1681, 4294901760
    %v1683 = vsub.f32 %v1681, %v1682
    %v1684 = vand.u32 %v1683, 4294901760
    %1685 = vmatpush1.msra.mxu0 %v1684
    %1686 = vmatprep.subr.mxu0 0.0
    %v1687 = vand.u32 %v1556, 4294901760
    %v1688 = vsub.f32 %v1556, %v1687
    %v1689 = vand.u32 %v1688, 4294901760
    %v1690 = vsub.f32 %v1688, %v1689
    %v1691 = vand.u32 %v1690, 4294901760
    %1692 = vmatpush1.msra.mxu0 %v1691
    %1693 = vmatprep.subr.mxu0 0.0
    %v1694 = vand.u32 %v1557, 4294901760
    %v1695 = vsub.f32 %v1557, %v1694
    %v1696 = vand.u32 %v1695, 4294901760
    %v1697 = vsub.f32 %v1695, %v1696
    %v1698 = vand.u32 %v1697, 4294901760
    %1699 = vmatpush1.msra.mxu0 %v1698
    %1700 = vmatprep.subr.mxu0 0.0
    %v1701 = vand.u32 %v1558, 4294901760
    %v1702 = vsub.f32 %v1558, %v1701
    %v1703 = vand.u32 %v1702, 4294901760
    %v1704 = vsub.f32 %v1702, %v1703
    %v1705 = vand.u32 %v1704, 4294901760
    %1706 = vmatpush1.msra.mxu0 %v1705
    %1707 = vmatprep.subr.mxu0 0.0
    %v1708 = vand.u32 %v1559, 4294901760
    %v1709 = vsub.f32 %v1559, %v1708
    %v1710 = vand.u32 %v1709, 4294901760
    %v1711 = vsub.f32 %v1709, %v1710
    %v1712 = vand.u32 %v1711, 4294901760
    %1713 = vmatpush1.msra.mxu0 %v1712
    %1714 = vmatprep.subr.mxu0 0.0
    %v1715 = vand.u32 %v1560, 4294901760
    %v1716 = vsub.f32 %v1560, %v1715
    %v1717 = vand.u32 %v1716, 4294901760
    %v1718 = vsub.f32 %v1716, %v1717
    %v1719 = vand.u32 %v1718, 4294901760
    %1720 = vmatpush1.msra.mxu0 %v1719
    %1721 = vmatprep.subr.mxu0 0.0
    %v1722 = vand.u32 %v1561, 4294901760
    %v1723 = vsub.f32 %v1561, %v1722
    %v1724 = vand.u32 %v1723, 4294901760
    %v1725 = vsub.f32 %v1723, %v1724
    %v1726 = vand.u32 %v1725, 4294901760
    %1727 = vmatpush1.msra.mxu0 %v1726
    %1728 = vmatprep.subr.mxu0 0.0
    %v1729 = vand.u32 %v1562, 4294901760
    %v1730 = vsub.f32 %v1562, %v1729
    %v1731 = vand.u32 %v1730, 4294901760
    %v1732 = vsub.f32 %v1730, %v1731
    %v1733 = vand.u32 %v1732, 4294901760
    %1734 = vmatpush1.msra.mxu0 %v1733
    %1735 = vmatprep.subr.mxu0 0.0
    %v1736 = vand.u32 %v1563, 4294901760
    %v1737 = vsub.f32 %v1563, %v1736
    %v1738 = vand.u32 %v1737, 4294901760
    %v1739 = vsub.f32 %v1737, %v1738
    %v1740 = vand.u32 %v1739, 4294901760
    %1741 = vmatpush1.msra.mxu0 %v1740
    %1742 = vmatprep.subr.mxu0 0.0
    %v1743 = vand.u32 %v1564, 4294901760
    %v1744 = vsub.f32 %v1564, %v1743
    %v1745 = vand.u32 %v1744, 4294901760
    %v1746 = vsub.f32 %v1744, %v1745
    %v1747 = vand.u32 %v1746, 4294901760
    %1748 = vmatpush1.msra.mxu0 %v1747
    %1749 = vmatprep.subr.mxu0 0.0
    %v1750 = vand.u32 %v1565, 4294901760
    %v1751 = vsub.f32 %v1565, %v1750
    %v1752 = vand.u32 %v1751, 4294901760
    %v1753 = vsub.f32 %v1751, %v1752
    %v1754 = vand.u32 %v1753, 4294901760
    %1755 = vmatpush1.msra.mxu0 %v1754
    %1756 = vmatprep.subr.mxu0 0.0
    %v1757 = vand.u32 %v1566, 4294901760
    %v1758 = vsub.f32 %v1566, %v1757
    %v1759 = vand.u32 %v1758, 4294901760
    %v1760 = vsub.f32 %v1758, %v1759
    %v1761 = vand.u32 %v1760, 4294901760
    %1762 = vmatpush1.msra.mxu0 %v1761
    %1763 = vmatprep.subr.mxu0 0.0
    %v1764 = vand.u32 %v1567, 4294901760
    %v1765 = vsub.f32 %v1567, %v1764
    %v1766 = vand.u32 %v1765, 4294901760
    %v1767 = vsub.f32 %v1765, %v1766
    %v1768 = vand.u32 %v1767, 4294901760
    %1769 = vmatpush1.msra.mxu0 %v1768
    %1770 = vmatprep.subr.mxu0 0.0
    %v1771 = vand.u32 %v1568, 4294901760
    %v1772 = vsub.f32 %v1568, %v1771
    %v1773 = vand.u32 %v1772, 4294901760
    %v1774 = vsub.f32 %v1772, %v1773
    %v1775 = vand.u32 %v1774, 4294901760
    %1776 = vmatpush1.msra.mxu0 %v1775
    %1777 = vmatprep.subr.mxu0 0.0
    %v1778 = vand.u32 %v1569, 4294901760
    %v1779 = vsub.f32 %v1569, %v1778
    %v1780 = vand.u32 %v1779, 4294901760
    %v1781 = vsub.f32 %v1779, %v1780
    %v1782 = vand.u32 %v1781, 4294901760
    %1783 = vmatpush1.msra.mxu0 %v1782
    %1784 = vmatprep.subr.mxu0 0.0
    %v1785 = vand.u32 %v1570, 4294901760
    %v1786 = vsub.f32 %v1570, %v1785
    %v1787 = vand.u32 %v1786, 4294901760
    %v1788 = vsub.f32 %v1786, %v1787
    %v1789 = vand.u32 %v1788, 4294901760
    %1790 = vmatpush1.msra.mxu0 %v1789
    %1791 = vmatprep.subr.mxu0 0.0
    %1792 = vmatpush1.msra.mxu0 0.0
    %1793 = vmatprep.subr.mxu0 0.0
    %1794 = vmatpush1.msra.mxu0 0.0
    %1795 = vmatprep.subr.mxu0 0.0
    %1796 = vmatpush1.msra.mxu0 0.0
    %1797 = vmatprep.subr.mxu0 0.0
    %1798 = vmatpush1.msra.mxu0 0.0
    %1799 = vmatprep.subr.mxu0 0.0
    %1800 = vmatpush1.msra.mxu0 0.0
    %1801 = vmatprep.subr.mxu0 0.0
    %1802 = vmatpush1.msra.mxu0 0.0
    %1803 = vmatprep.subr.mxu0 0.0
    %1804 = vmatpush1.msra.mxu0 0.0
    %1805 = vmatprep.subr.mxu0 0.0
    %1806 = vmatpush1.msra.mxu0 0.0
    %1807 = vmatprep.subr.mxu0 0.0
    %1808 = vmatpush1.msra.mxu0 0.0
    %1809 = vmatprep.subr.mxu0 0.0
    %1810 = vmatpush1.msra.mxu0 0.0
    %1811 = vmatprep.subr.mxu0 0.0
    %1812 = vmatpush1.msra.mxu0 0.0
    %1813 = vmatprep.subr.mxu0 0.0
    %1814 = vmatpush1.msra.mxu0 0.0
    %1815 = vmatprep.subr.mxu0 0.0
    %1816 = vmatpush1.msra.mxu0 0.0
    %1817 = vmatprep.subr.mxu0 0.0
    %1818 = vmatpush1.msra.mxu0 0.0
    %1819 = vmatprep.subr.mxu0 0.0
    %1820 = vmatpush1.msra.mxu0 0.0
    %1821 = vmatprep.subr.mxu0 0.0
    %1822 = vmatpush1.msra.mxu0 0.0
    %1823 = vmatprep.mubr.f32.mxu0 0.0
    %v1824 = vand.u32 %v1553, 4294901760
    %1825 = vmatmul.mubr.f32.gmra.mrb[0].mxu0 %v1824
    %v1826 = vpop.f32.mrb[0].mxu0
    %v1827 = vadd.f32 %v1666, %v1826
    %v1828 = vpop.f32.mrb[0].mxu0
    %1829 = vmatprep.mubr.f32.mxu0 0.0
    %v1830 = vand.u32 %v1554, 4294901760
    %1831 = vmatmul.mubr.f32.gmra.mrb[0].mxu0 %v1830
    %v1832 = vpop.f32.mrb[0].mxu0
    %v1833 = vadd.f32 %v1676, %v1832
    %v1834 = vpop.f32.mrb[0].mxu0
    %1835 = vdwg.mxu0
    %1836 = vmatprep.subr.mxu0 0.0
    %v1837 = vand.u32 %v1555, 4294901760
    %v1838 = vsub.f32 %v1555, %v1837
    %1839 = vmatpush1.msra.mxu0 %v1838
    %1840 = vmatprep.subr.mxu0 0.0
    %v1841 = vand.u32 %v1556, 4294901760
    %v1842 = vsub.f32 %v1556, %v1841
    %1843 = vmatpush1.msra.mxu0 %v1842
    %1844 = vmatprep.subr.mxu0 0.0
    %v1845 = vand.u32 %v1557, 4294901760
    %v1846 = vsub.f32 %v1557, %v1845
    %1847 = vmatpush1.msra.mxu0 %v1846
    %1848 = vmatprep.subr.mxu0 0.0
    %v1849 = vand.u32 %v1558, 4294901760
    %v1850 = vsub.f32 %v1558, %v1849
    %1851 = vmatpush1.msra.mxu0 %v1850
    %1852 = vmatprep.subr.mxu0 0.0
    %v1853 = vand.u32 %v1559, 4294901760
    %v1854 = vsub.f32 %v1559, %v1853
    %1855 = vmatpush1.msra.mxu0 %v1854
    %1856 = vmatprep.subr.mxu0 0.0
    %v1857 = vand.u32 %v1560, 4294901760
    %v1858 = vsub.f32 %v1560, %v1857
    %1859 = vmatpush1.msra.mxu0 %v1858
    %1860 = vmatprep.subr.mxu0 0.0
    %v1861 = vand.u32 %v1561, 4294901760
    %v1862 = vsub.f32 %v1561, %v1861
    %1863 = vmatpush1.msra.mxu0 %v1862
    %1864 = vmatprep.subr.mxu0 0.0
    %v1865 = vand.u32 %v1562, 4294901760
    %v1866 = vsub.f32 %v1562, %v1865
    %1867 = vmatpush1.msra.mxu0 %v1866
    %1868 = vmatprep.subr.mxu0 0.0
    %v1869 = vand.u32 %v1563, 4294901760
    %v1870 = vsub.f32 %v1563, %v1869
    %1871 = vmatpush1.msra.mxu0 %v1870
    %1872 = vmatprep.subr.mxu0 0.0
    %v1873 = vand.u32 %v1564, 4294901760
    %v1874 = vsub.f32 %v1564, %v1873
    %1875 = vmatpush1.msra.mxu0 %v1874
    %1876 = vmatprep.subr.mxu0 0.0
    %v1877 = vand.u32 %v1565, 4294901760
    %v1878 = vsub.f32 %v1565, %v1877
    %1879 = vmatpush1.msra.mxu0 %v1878
    %1880 = vmatprep.subr.mxu0 0.0
    %v1881 = vand.u32 %v1566, 4294901760
    %v1882 = vsub.f32 %v1566, %v1881
    %1883 = vmatpush1.msra.mxu0 %v1882
    %1884 = vmatprep.subr.mxu0 0.0
    %v1885 = vand.u32 %v1567, 4294901760
    %v1886 = vsub.f32 %v1567, %v1885
    %1887 = vmatpush1.msra.mxu0 %v1886
    %1888 = vmatprep.subr.mxu0 0.0
    %v1889 = vand.u32 %v1568, 4294901760
    %v1890 = vsub.f32 %v1568, %v1889
    %1891 = vmatpush1.msra.mxu0 %v1890
    %1892 = vmatprep.subr.mxu0 0.0
    %v1893 = vand.u32 %v1569, 4294901760
    %v1894 = vsub.f32 %v1569, %v1893
    %1895 = vmatpush1.msra.mxu0 %v1894
    %1896 = vmatprep.subr.mxu0 0.0
    %v1897 = vand.u32 %v1570, 4294901760
    %v1898 = vsub.f32 %v1570, %v1897
    %1899 = vmatpush1.msra.mxu0 %v1898
    %1900 = vmatprep.subr.mxu0 0.0
    %1901 = vmatpush1.msra.mxu0 0.0
    %1902 = vmatprep.subr.mxu0 0.0
    %1903 = vmatpush1.msra.mxu0 0.0
    %1904 = vmatprep.subr.mxu0 0.0
    %1905 = vmatpush1.msra.mxu0 0.0
    %1906 = vmatprep.subr.mxu0 0.0
    %1907 = vmatpush1.msra.mxu0 0.0
    %1908 = vmatprep.subr.mxu0 0.0
    %1909 = vmatpush1.msra.mxu0 0.0
    %1910 = vmatprep.subr.mxu0 0.0
    %1911 = vmatpush1.msra.mxu0 0.0
    %1912 = vmatprep.subr.mxu0 0.0
    %1913 = vmatpush1.msra.mxu0 0.0
    %1914 = vmatprep.subr.mxu0 0.0
    %1915 = vmatpush1.msra.mxu0 0.0
    %1916 = vmatprep.subr.mxu0 0.0
    %1917 = vmatpush1.msra.mxu0 0.0
    %1918 = vmatprep.subr.mxu0 0.0
    %1919 = vmatpush1.msra.mxu0 0.0
    %1920 = vmatprep.subr.mxu0 0.0
    %1921 = vmatpush1.msra.mxu0 0.0
    %1922 = vmatprep.subr.mxu0 0.0
    %1923 = vmatpush1.msra.mxu0 0.0
    %1924 = vmatprep.subr.mxu0 0.0
    %1925 = vmatpush1.msra.mxu0 0.0
    %1926 = vmatprep.subr.mxu0 0.0
    %1927 = vmatpush1.msra.mxu0 0.0
    %1928 = vmatprep.subr.mxu0 0.0
    %1929 = vmatpush1.msra.mxu0 0.0
    %1930 = vmatprep.subr.mxu0 0.0
    %1931 = vmatpush1.msra.mxu0 0.0
    %1932 = vmatprep.mubr.f32.mxu0 0.0
    %v1933 = vand.u32 %v1553, 4294901760
    %v1934 = vsub.f32 %v1553, %v1933
    %1935 = vmatmul.mubr.f32.gmra.mrb[0].mxu0 %v1934
    %v1936 = vpop.f32.mrb[0].mxu0
    %v1937 = vadd.f32 %v1827, %v1936
    %v1938 = vpop.f32.mrb[0].mxu0
    %1939 = vmatprep.mubr.f32.mxu0 0.0
    %v1940 = vand.u32 %v1554, 4294901760
    %v1941 = vsub.f32 %v1554, %v1940
    %1942 = vmatmul.mubr.f32.gmra.mrb[0].mxu0 %v1941
    %v1943 = vpop.f32.mrb[0].mxu0
    %v1944 = vadd.f32 %v1833, %v1943
    %v1945 = vpop.f32.mrb[0].mxu0
    %1946 = vdwg.mxu0
    %1947 = vmatprep.subr.mxu0 0.0
    %v1948 = vand.u32 %v1555, 4294901760
    %1949 = vmatpush1.msra.mxu0 %v1948
    %1950 = vmatprep.subr.mxu0 0.0
    %v1951 = vand.u32 %v1556, 4294901760
    %1952 = vmatpush1.msra.mxu0 %v1951
    %1953 = vmatprep.subr.mxu0 0.0
    %v1954 = vand.u32 %v1557, 4294901760
    %1955 = vmatpush1.msra.mxu0 %v1954
    %1956 = vmatprep.subr.mxu0 0.0
    %v1957 = vand.u32 %v1558, 4294901760
    %1958 = vmatpush1.msra.mxu0 %v1957
    %1959 = vmatprep.subr.mxu0 0.0
    %v1960 = vand.u32 %v1559, 4294901760
    %1961 = vmatpush1.msra.mxu0 %v1960
    %1962 = vmatprep.subr.mxu0 0.0
    %v1963 = vand.u32 %v1560, 4294901760
    %1964 = vmatpush1.msra.mxu0 %v1963
    %1965 = vmatprep.subr.mxu0 0.0
    %v1966 = vand.u32 %v1561, 4294901760
    %1967 = vmatpush1.msra.mxu0 %v1966
    %1968 = vmatprep.subr.mxu0 0.0
    %v1969 = vand.u32 %v1562, 4294901760
    %1970 = vmatpush1.msra.mxu0 %v1969
    %1971 = vmatprep.subr.mxu0 0.0
    %v1972 = vand.u32 %v1563, 4294901760
    %1973 = vmatpush1.msra.mxu0 %v1972
    %1974 = vmatprep.subr.mxu0 0.0
    %v1975 = vand.u32 %v1564, 4294901760
    %1976 = vmatpush1.msra.mxu0 %v1975
    %1977 = vmatprep.subr.mxu0 0.0
    %v1978 = vand.u32 %v1565, 4294901760
    %1979 = vmatpush1.msra.mxu0 %v1978
    %1980 = vmatprep.subr.mxu0 0.0
    %v1981 = vand.u32 %v1566, 4294901760
    %1982 = vmatpush1.msra.mxu0 %v1981
    %1983 = vmatprep.subr.mxu0 0.0
    %v1984 = vand.u32 %v1567, 4294901760
    %1985 = vmatpush1.msra.mxu0 %v1984
    %1986 = vmatprep.subr.mxu0 0.0
    %v1987 = vand.u32 %v1568, 4294901760
    %1988 = vmatpush1.msra.mxu0 %v1987
    %1989 = vmatprep.subr.mxu0 0.0
    %v1990 = vand.u32 %v1569, 4294901760
    %1991 = vmatpush1.msra.mxu0 %v1990
    %1992 = vmatprep.subr.mxu0 0.0
    %v1993 = vand.u32 %v1570, 4294901760
    %1994 = vmatpush1.msra.mxu0 %v1993
    %1995 = vmatprep.subr.mxu0 0.0
    %1996 = vmatpush1.msra.mxu0 0.0
    %1997 = vmatprep.subr.mxu0 0.0
    %1998 = vmatpush1.msra.mxu0 0.0
    %1999 = vmatprep.subr.mxu0 0.0
    %2000 = vmatpush1.msra.mxu0 0.0
    %2001 = vmatprep.subr.mxu0 0.0
    %2002 = vmatpush1.msra.mxu0 0.0
    %2003 = vmatprep.subr.mxu0 0.0
    %2004 = vmatpush1.msra.mxu0 0.0
    %2005 = vmatprep.subr.mxu0 0.0
    %2006 = vmatpush1.msra.mxu0 0.0
    %2007 = vmatprep.subr.mxu0 0.0
    %2008 = vmatpush1.msra.mxu0 0.0
    %2009 = vmatprep.subr.mxu0 0.0
    %2010 = vmatpush1.msra.mxu0 0.0
    %2011 = vmatprep.subr.mxu0 0.0
    %2012 = vmatpush1.msra.mxu0 0.0
    %2013 = vmatprep.subr.mxu0 0.0
    %2014 = vmatpush1.msra.mxu0 0.0
    %2015 = vmatprep.subr.mxu0 0.0
    %2016 = vmatpush1.msra.mxu0 0.0
    %2017 = vmatprep.subr.mxu0 0.0
    %2018 = vmatpush1.msra.mxu0 0.0
    %2019 = vmatprep.subr.mxu0 0.0
    %2020 = vmatpush1.msra.mxu0 0.0
    %2021 = vmatprep.subr.mxu0 0.0
    %2022 = vmatpush1.msra.mxu0 0.0
    %2023 = vmatprep.subr.mxu0 0.0
    %2024 = vmatpush1.msra.mxu0 0.0
    %2025 = vmatprep.subr.mxu0 0.0
    %2026 = vmatpush1.msra.mxu0 0.0
    %2027 = vmatprep.mubr.f32.mxu0 0.0
    %v2028 = vand.u32 %v1553, 4294901760
    %v2029 = vsub.f32 %v1553, %v2028
    %v2030 = vand.u32 %v2029, 4294901760
    %2031 = vmatmul.mubr.f32.gmra.mrb[0].mxu0 %v2030
    %v2032 = vpop.f32.mrb[0].mxu0
    %v2033 = vadd.f32 %v1937, %v2032
    %v2034 = vpop.f32.mrb[0].mxu0
    %2035 = vmatprep.mubr.f32.mxu0 0.0
    %v2036 = vand.u32 %v1554, 4294901760
    %v2037 = vsub.f32 %v1554, %v2036
    %v2038 = vand.u32 %v2037, 4294901760
    %2039 = vmatmul.mubr.f32.gmra.mrb[0].mxu0 %v2038
    %v2040 = vpop.f32.mrb[0].mxu0
    %v2041 = vadd.f32 %v1944, %v2040
    %v2042 = vpop.f32.mrb[0].mxu0
    %2043 = vdwg.mxu0
    %2044 = vmatprep.subr.mxu0 0.0
    %v2045 = vand.u32 %v1555, 4294901760
    %v2046 = vsub.f32 %v1555, %v2045
    %v2047 = vand.u32 %v2046, 4294901760
    %2048 = vmatpush1.msra.mxu0 %v2047
    %2049 = vmatprep.subr.mxu0 0.0
    %v2050 = vand.u32 %v1556, 4294901760
    %v2051 = vsub.f32 %v1556, %v2050
    %v2052 = vand.u32 %v2051, 4294901760
    %2053 = vmatpush1.msra.mxu0 %v2052
    %2054 = vmatprep.subr.mxu0 0.0
    %v2055 = vand.u32 %v1557, 4294901760
    %v2056 = vsub.f32 %v1557, %v2055
    %v2057 = vand.u32 %v2056, 4294901760
    %2058 = vmatpush1.msra.mxu0 %v2057
    %2059 = vmatprep.subr.mxu0 0.0
    %v2060 = vand.u32 %v1558, 4294901760
    %v2061 = vsub.f32 %v1558, %v2060
    %v2062 = vand.u32 %v2061, 4294901760
    %2063 = vmatpush1.msra.mxu0 %v2062
    %2064 = vmatprep.subr.mxu0 0.0
    %v2065 = vand.u32 %v1559, 4294901760
    %v2066 = vsub.f32 %v1559, %v2065
    %v2067 = vand.u32 %v2066, 4294901760
    %2068 = vmatpush1.msra.mxu0 %v2067
    %2069 = vmatprep.subr.mxu0 0.0
    %v2070 = vand.u32 %v1560, 4294901760
    %v2071 = vsub.f32 %v1560, %v2070
    %v2072 = vand.u32 %v2071, 4294901760
    %2073 = vmatpush1.msra.mxu0 %v2072
    %2074 = vmatprep.subr.mxu0 0.0
    %v2075 = vand.u32 %v1561, 4294901760
    %v2076 = vsub.f32 %v1561, %v2075
    %v2077 = vand.u32 %v2076, 4294901760
    %2078 = vmatpush1.msra.mxu0 %v2077
    %2079 = vmatprep.subr.mxu0 0.0
    %v2080 = vand.u32 %v1562, 4294901760
    %v2081 = vsub.f32 %v1562, %v2080
    %v2082 = vand.u32 %v2081, 4294901760
    %2083 = vmatpush1.msra.mxu0 %v2082
    %2084 = vmatprep.subr.mxu0 0.0
    %v2085 = vand.u32 %v1563, 4294901760
    %v2086 = vsub.f32 %v1563, %v2085
    %v2087 = vand.u32 %v2086, 4294901760
    %2088 = vmatpush1.msra.mxu0 %v2087
    %2089 = vmatprep.subr.mxu0 0.0
    %v2090 = vand.u32 %v1564, 4294901760
    %v2091 = vsub.f32 %v1564, %v2090
    %v2092 = vand.u32 %v2091, 4294901760
    %2093 = vmatpush1.msra.mxu0 %v2092
    %2094 = vmatprep.subr.mxu0 0.0
    %v2095 = vand.u32 %v1565, 4294901760
    %v2096 = vsub.f32 %v1565, %v2095
    %v2097 = vand.u32 %v2096, 4294901760
    %2098 = vmatpush1.msra.mxu0 %v2097
    %2099 = vmatprep.subr.mxu0 0.0
    %v2100 = vand.u32 %v1566, 4294901760
    %v2101 = vsub.f32 %v1566, %v2100
    %v2102 = vand.u32 %v2101, 4294901760
    %2103 = vmatpush1.msra.mxu0 %v2102
    %2104 = vmatprep.subr.mxu0 0.0
    %v2105 = vand.u32 %v1567, 4294901760
    %v2106 = vsub.f32 %v1567, %v2105
    %v2107 = vand.u32 %v2106, 4294901760
    %2108 = vmatpush1.msra.mxu0 %v2107
    %2109 = vmatprep.subr.mxu0 0.0
    %v2110 = vand.u32 %v1568, 4294901760
    %v2111 = vsub.f32 %v1568, %v2110
    %v2112 = vand.u32 %v2111, 4294901760
    %2113 = vmatpush1.msra.mxu0 %v2112
    %2114 = vmatprep.subr.mxu0 0.0
    %v2115 = vand.u32 %v1569, 4294901760
    %v2116 = vsub.f32 %v1569, %v2115
    %v2117 = vand.u32 %v2116, 4294901760
    %2118 = vmatpush1.msra.mxu0 %v2117
    %2119 = vmatprep.subr.mxu0 0.0
    %v2120 = vand.u32 %v1570, 4294901760
    %v2121 = vsub.f32 %v1570, %v2120
    %v2122 = vand.u32 %v2121, 4294901760
    %2123 = vmatpush1.msra.mxu0 %v2122
    %2124 = vmatprep.subr.mxu0 0.0
    %2125 = vmatpush1.msra.mxu0 0.0
    %2126 = vmatprep.subr.mxu0 0.0
    %2127 = vmatpush1.msra.mxu0 0.0
    %2128 = vmatprep.subr.mxu0 0.0
    %2129 = vmatpush1.msra.mxu0 0.0
    %2130 = vmatprep.subr.mxu0 0.0
    %2131 = vmatpush1.msra.mxu0 0.0
    %2132 = vmatprep.subr.mxu0 0.0
    %2133 = vmatpush1.msra.mxu0 0.0
    %2134 = vmatprep.subr.mxu0 0.0
    %2135 = vmatpush1.msra.mxu0 0.0
    %2136 = vmatprep.subr.mxu0 0.0
    %2137 = vmatpush1.msra.mxu0 0.0
    %2138 = vmatprep.subr.mxu0 0.0
    %2139 = vmatpush1.msra.mxu0 0.0
    %2140 = vmatprep.subr.mxu0 0.0
    %2141 = vmatpush1.msra.mxu0 0.0
    %2142 = vmatprep.subr.mxu0 0.0
    %2143 = vmatpush1.msra.mxu0 0.0
    %2144 = vmatprep.subr.mxu0 0.0
    %2145 = vmatpush1.msra.mxu0 0.0
    %2146 = vmatprep.subr.mxu0 0.0
    %2147 = vmatpush1.msra.mxu0 0.0
    %2148 = vmatprep.subr.mxu0 0.0
    %2149 = vmatpush1.msra.mxu0 0.0
    %2150 = vmatprep.subr.mxu0 0.0
    %2151 = vmatpush1.msra.mxu0 0.0
    %2152 = vmatprep.subr.mxu0 0.0
    %2153 = vmatpush1.msra.mxu0 0.0
    %2154 = vmatprep.subr.mxu0 0.0
    %2155 = vmatpush1.msra.mxu0 0.0
    %2156 = vmatprep.mubr.f32.mxu0 0.0
    %v2157 = vand.u32 %v1553, 4294901760
    %2158 = vmatmul.mubr.f32.gmra.mrb[0].mxu0 %v2157
    %v2159 = vpop.f32.mrb[0].mxu0
    %v2160 = vadd.f32 %v2033, %v2159
    %v2161 = vpop.f32.mrb[0].mxu0
    %2162 = vmatprep.mubr.f32.mxu0 0.0
    %v2163 = vand.u32 %v1554, 4294901760
    %2164 = vmatmul.mubr.f32.gmra.mrb[0].mxu0 %v2163
    %v2165 = vpop.f32.mrb[0].mxu0
    %v2166 = vadd.f32 %v2041, %v2165
    %v2167 = vpop.f32.mrb[0].mxu0
    %2168 = vdwg.mxu0
    %2169 = vmatprep.subr.mxu0 0.0
    %v2170 = vand.u32 %v1555, 4294901760
    %2171 = vmatpush1.msra.mxu0 %v2170
    %2172 = vmatprep.subr.mxu0 0.0
    %v2173 = vand.u32 %v1556, 4294901760
    %2174 = vmatpush1.msra.mxu0 %v2173
    %2175 = vmatprep.subr.mxu0 0.0
    %v2176 = vand.u32 %v1557, 4294901760
    %2177 = vmatpush1.msra.mxu0 %v2176
    %2178 = vmatprep.subr.mxu0 0.0
    %v2179 = vand.u32 %v1558, 4294901760
    %2180 = vmatpush1.msra.mxu0 %v2179
    %2181 = vmatprep.subr.mxu0 0.0
    %v2182 = vand.u32 %v1559, 4294901760
    %2183 = vmatpush1.msra.mxu0 %v2182
    %2184 = vmatprep.subr.mxu0 0.0
    %v2185 = vand.u32 %v1560, 4294901760
    %2186 = vmatpush1.msra.mxu0 %v2185
    %2187 = vmatprep.subr.mxu0 0.0
    %v2188 = vand.u32 %v1561, 4294901760
    %2189 = vmatpush1.msra.mxu0 %v2188
    %2190 = vmatprep.subr.mxu0 0.0
    %v2191 = vand.u32 %v1562, 4294901760
    %2192 = vmatpush1.msra.mxu0 %v2191
    %2193 = vmatprep.subr.mxu0 0.0
    %v2194 = vand.u32 %v1563, 4294901760
    %2195 = vmatpush1.msra.mxu0 %v2194
    %2196 = vmatprep.subr.mxu0 0.0
    %v2197 = vand.u32 %v1564, 4294901760
    %2198 = vmatpush1.msra.mxu0 %v2197
    %2199 = vmatprep.subr.mxu0 0.0
    %v2200 = vand.u32 %v1565, 4294901760
    %2201 = vmatpush1.msra.mxu0 %v2200
    %2202 = vmatprep.subr.mxu0 0.0
    %v2203 = vand.u32 %v1566, 4294901760
    %2204 = vmatpush1.msra.mxu0 %v2203
    %2205 = vmatprep.subr.mxu0 0.0
    %v2206 = vand.u32 %v1567, 4294901760
    %2207 = vmatpush1.msra.mxu0 %v2206
    %2208 = vmatprep.subr.mxu0 0.0
    %v2209 = vand.u32 %v1568, 4294901760
    %2210 = vmatpush1.msra.mxu0 %v2209
    %2211 = vmatprep.subr.mxu0 0.0
    %v2212 = vand.u32 %v1569, 4294901760
    %2213 = vmatpush1.msra.mxu0 %v2212
    %2214 = vmatprep.subr.mxu0 0.0
    %v2215 = vand.u32 %v1570, 4294901760
    %2216 = vmatpush1.msra.mxu0 %v2215
    %2217 = vmatprep.subr.mxu0 0.0
    %2218 = vmatpush1.msra.mxu0 0.0
    %2219 = vmatprep.subr.mxu0 0.0
    %2220 = vmatpush1.msra.mxu0 0.0
    %2221 = vmatprep.subr.mxu0 0.0
    %2222 = vmatpush1.msra.mxu0 0.0
    %2223 = vmatprep.subr.mxu0 0.0
    %2224 = vmatpush1.msra.mxu0 0.0
    %2225 = vmatprep.subr.mxu0 0.0
    %2226 = vmatpush1.msra.mxu0 0.0
    %2227 = vmatprep.subr.mxu0 0.0
    %2228 = vmatpush1.msra.mxu0 0.0
    %2229 = vmatprep.subr.mxu0 0.0
    %2230 = vmatpush1.msra.mxu0 0.0
    %2231 = vmatprep.subr.mxu0 0.0
    %2232 = vmatpush1.msra.mxu0 0.0
    %2233 = vmatprep.subr.mxu0 0.0
    %2234 = vmatpush1.msra.mxu0 0.0
    %2235 = vmatprep.subr.mxu0 0.0
    %2236 = vmatpush1.msra.mxu0 0.0
    %2237 = vmatprep.subr.mxu0 0.0
    %2238 = vmatpush1.msra.mxu0 0.0
    %2239 = vmatprep.subr.mxu0 0.0
    %2240 = vmatpush1.msra.mxu0 0.0
    %2241 = vmatprep.subr.mxu0 0.0
    %2242 = vmatpush1.msra.mxu0 0.0
    %2243 = vmatprep.subr.mxu0 0.0
    %2244 = vmatpush1.msra.mxu0 0.0
    %2245 = vmatprep.subr.mxu0 0.0
    %2246 = vmatpush1.msra.mxu0 0.0
    %2247 = vmatprep.subr.mxu0 0.0
    %2248 = vmatpush1.msra.mxu0 0.0
    %2249 = vmatprep.mubr.f32.mxu0 0.0
    %v2250 = vand.u32 %v1553, 4294901760
    %2251 = vmatmul.mubr.f32.gmra.mrb[0].mxu0 %v2250
    %v2252 = vpop.f32.mrb[0].mxu0
    %v2253 = vadd.f32 %v2160, %v2252
    %v2254 = vpop.f32.mrb[0].mxu0
    %2255 = vmatprep.mubr.f32.mxu0 0.0
    %v2256 = vand.u32 %v1554, 4294901760
    %2257 = vmatmul.mubr.f32.gmra.mrb[0].mxu0 %v2256
    %v2258 = vpop.f32.mrb[0].mxu0
    %v2259 = vadd.f32 %v2166, %v2258
    %v2260 = vpop.f32.mrb[0].mxu0
    %2261 = vdwg.mxu0
    %2262 = vxpose.xlu0.b32.start [1/16] %v2253, 128
    %2263 = vxpose.xlu0.b32.cont [2/16] %v2259, 128
    %2264 = vxpose.xlu0.b32.cont [3/16] 0.0, 128
    %2265 = vxpose.xlu0.b32.cont [4/16] 0.0, 128
    %2266 = vxpose.xlu0.b32.cont [5/16] 0.0, 128
    %2267 = vxpose.xlu0.b32.cont [6/16] 0.0, 128
    %2268 = vxpose.xlu0.b32.cont [7/16] 0.0, 128
    %2269 = vxpose.xlu0.b32.cont [8/16] 0.0, 128
    %2270 = vxpose.xlu0.b32.cont [9/16] 0.0, 128
    %2271 = vxpose.xlu0.b32.cont [10/16] 0.0, 128
    %2272 = vxpose.xlu0.b32.cont [11/16] 0.0, 128
    %2273 = vxpose.xlu0.b32.cont [12/16] 0.0, 128
    %2274 = vxpose.xlu0.b32.cont [13/16] 0.0, 128
    %2275 = vxpose.xlu0.b32.cont [14/16] 0.0, 128
    %2276 = vxpose.xlu0.b32.cont [15/16] 0.0, 128
    %2277 = vxpose.xlu0.b32.end [16/16] 0.0, 128
    %v2278 = vpop.trf.xlu0
    %v2279 = vpop.trf.xlu0
    %v2280 = vpop.trf.xlu0
    %v2281 = vpop.trf.xlu0
    %v2282 = vpop.trf.xlu0
    %v2283 = vpop.trf.xlu0
    %v2284 = vpop.trf.xlu0
    %v2285 = vpop.trf.xlu0
    %v2286 = vpop.trf.xlu0
    %v2287 = vpop.trf.xlu0
    %v2288 = vpop.trf.xlu0
    %v2289 = vpop.trf.xlu0
    %v2290 = vpop.trf.xlu0
    %v2291 = vpop.trf.xlu0
    %v2292 = vpop.trf.xlu0
    %v2293 = vpop.trf.xlu0
    %v2294 = vtanh.pop %v2278
    %vm2295 = vcmask 130048
    %2296 = vst.msk [vmem:[#allocation10] sm:$0xff] %vm2295, %v2294
    // Predicated region
    $region46: #{tpu_custom_call.1} parent=1 // pred_check
      _
    $region47: #{tpu_custom_call.1} parent=1 // pred_check_branch
      %2298 = sbr.rel (0) target = $region49
    $region48: #{tpu_custom_call.1} parent=1 // pred_region
      %s2300 = ssub.s32 128, 128
      %2301 = vsyncadd [#allocation4], %s2300
      %s2303 = sshll.u32 [#allocation10], 4
      %s2304 = int_to_ptr.vmem [resolvable:$true] %s2303
      %2306 = dma.vmem_to_hbm [thread:$0]  %s2304, 128, %s7, [#allocation4]
    $region49: #{tpu_custom_call.1} parent=1 // pred_fallthru
      _
    // Predicated region
    $region50: #{tpu_custom_call.1} parent=1 // pred_check
      _
    $region51: #{tpu_custom_call.1} parent=1 // pred_check_branch
      %2308 = sbr.rel (0) target = $region53
    $region52: #{tpu_custom_call.1} parent=1 // pred_region
      %2309 = dma.done [#allocation4], 128
    $region53: #{tpu_custom_call.1} parent=1 // pred_fallthru
      _
    %2310 = vsyncpa [#allocation3], 1
    %2311 = vsyncpa [#allocation6], 1
    %2312 = vsyncpa [#allocation9], 1
    %2313 = vsyncpa [#allocation4], 1

</llo_original>
